<compile_context>
chip_gen: v7x
topology: tpu7x:2x2x1
jax: 0.10.0
libtpu: 0.0.40
codegen_flags: <defaults>
</compile_context>

<pallas_src>
import functools

import jax
import jax.numpy as jnp
from jax.experimental import pallas as pl
from jax.experimental.pallas import tpu as pltpu


DILATIONS = (1, 3, 5)


def _round_up(v, m):
    return (v + m - 1) // m * m


def _rfe_kernel(xflat_ref, wconv_ref, bb_ref, wf_ref, fb_ref, out_ref, col_ref,
                *, dilations, wp, p_min, lout, cp):
    """One grid step = one batch element, all work on (channels, lanes) tiles.

    xflat_ref : (1, CP, FL)    bf16  flattened max-padded input (CP = padded C)
    wconv_ref : (M1, 27*CP)    bf16  block-diag conv weight, branch BN scale folded
    bb_ref    : (M1, 1)        f32   per-branch BN bias
    wf_ref    : (OP, M1)       bf16  merged 1x1 weight, final BN scale folded
    fb_ref    : (OP, 1)        f32   final BN bias
    out_ref   : (1, OP, lout)  f32   lane-dense output slab (junk rows/lanes are 0)
    col_ref   : (27*CP, lout)  bf16  im2col scratch; every write is a full tile
    """
    # Center tap (ky=kx=1) is the same slice for every dilation: load it once.
    center = xflat_ref[0, :, p_min:p_min + lout]                   # (CP, lout) bf16

    # Build the stacked im2col for all 3 branches with full-tile aligned stores.
    for b, d in enumerate(dilations):
        for ky in range(3):
            for kx in range(3):
                t = b * 9 + ky * 3 + kx
                if ky == 1 and kx == 1:
                    col_ref[t * cp:(t + 1) * cp, :] = center
                else:
                    start = p_min + ((ky - 1) * wp + (kx - 1)) * d
                    col_ref[t * cp:(t + 1) * cp, :] = (
                        xflat_ref[0, :, start:start + lout])

    # One MXU matmul for all three dilated 3x3 convs (block-diagonal weight).
    z = jnp.dot(wconv_ref[...], col_ref[...],
                preferred_element_type=jnp.float32)                # (M1, lout) f32
    a = jnp.maximum(z + bb_ref[...], 0.0).astype(jnp.bfloat16)     # branch BN + ReLU

    # One merged 1x1 conv over the concatenated branch activations.
    acc = jnp.dot(wf_ref[...], a,
                  preferred_element_type=jnp.float32)              # (OP, lout) f32

    res = center.astype(jnp.float32)          # residual; padded rows are exact 0
    y = jnp.maximum(acc + fb_ref[...] + res, 0.0)                  # final BN bias + ReLU
    out_ref[0] = y.astype(out_ref.dtype)


def rfe_forward(x, conv_ws, br_scale, br_bias, w1x1, f_scale, f_bias):
    """x: (N, C, H, W) float32 NCHW.  Returns (N, Cout, H, W) float32."""
    N, C, H, W = x.shape
    Cout = w1x1.shape[1]
    nb = len(DILATIONS)
    assert Cout == C, "residual add requires out_channels == in_channels"
    assert w1x1.shape[0] == nb * Cout

    # The flattened-row tap trick is valid only if the spatial pad covers the
    # largest tap offset of the 3x3 kernel: P >= ((k-1)//2) * max(dilation).
    P = max(DILATIONS)
    assert P >= ((3 - 1) // 2) * max(DILATIONS)

    CP = _round_up(C, 16)             # bf16 sublane tile -> full-tile im2col stores
    OP = CP                           # padded output rows (>= Cout, multiple of 8)
    M1 = _round_up(nb * Cout, 16)     # padded branch-activation rows
    K = nb * 9 * CP                   # stacked im2col depth

    Hp, Wp = H + 2 * P, W + 2 * P
    p_min = P * Wp + P                          # flat index of output pixel (0, 0)
    lout = _round_up(H * Wp, 128)               # lane-dense output span
    max_shift = (Wp + 1) * P                    # largest positive tap offset
    fl = _round_up(p_min + max_shift + lout, 128)

    # Single max-dilation zero-pad (1x HBM activation traffic), pad channels to
    # CP, flatten spatial dims onto the lane axis, cast to bf16 for the MXU.
    xp = jnp.pad(x, ((0, 0), (0, CP - C), (P, P), (P, P)))           # (N, CP, Hp, Wp)
    xflat = xp.reshape(N, CP, Hp * Wp)
    xflat = jnp.pad(xflat, ((0, 0), (0, 0), (0, fl - Hp * Wp)))
    xflat = xflat.astype(jnp.bfloat16)                               # (N, CP, fl)

    # ---- one-time parameter folding (BN scales into weights, cast bf16) -----
    # Block-diagonal conv weight: rows b*Cout..(b+1)*Cout-1 hold branch b's
    # folded (Cout, 9*CP) weight at column offset b*9*CP; everything else is 0.
    wconv = jnp.zeros((M1, K), jnp.float32)
    for b in range(nb):
        wb = jnp.transpose(conv_ws[b] * br_scale[b][None, None, None, :],
                           (3, 0, 1, 2)).reshape(Cout, 9, C)         # (Cout, 9, C)
        wb = jnp.pad(wb, ((0, 0), (0, 0), (0, CP - C))).reshape(Cout, 9 * CP)
        wconv = wconv.at[b * Cout:(b + 1) * Cout,
                         b * 9 * CP:(b + 1) * 9 * CP].set(wb)
    wconv = wconv.astype(jnp.bfloat16)

    bb = jnp.zeros((M1, 1), jnp.float32).at[:nb * Cout, 0].set(br_bias.reshape(-1))

    # Merged 1x1 weight with final BN scale folded: (OP, M1).
    wf = jnp.zeros((OP, M1), jnp.float32)
    wf = wf.at[:Cout, :nb * Cout].set((w1x1 * f_scale[None, :]).T)
    wf = wf.astype(jnp.bfloat16)

    fb = jnp.zeros((OP, 1), jnp.float32).at[:Cout, 0].set(f_bias)

    kernel = functools.partial(_rfe_kernel, dilations=DILATIONS, wp=Wp,
                               p_min=p_min, lout=lout, cp=CP)

    out_buf = pl.pallas_call(
        kernel,
        out_shape=jax.ShapeDtypeStruct((N, OP, lout), jnp.float32),
        grid_spec=pltpu.PrefetchScalarGridSpec(
            num_scalar_prefetch=0,
            grid=(N,),
            in_specs=[
                pl.BlockSpec((1, CP, fl), lambda n: (n, 0, 0)),
                pl.BlockSpec((M1, K), lambda n: (0, 0)),
                pl.BlockSpec((M1, 1), lambda n: (0, 0)),
                pl.BlockSpec((OP, M1), lambda n: (0, 0)),
                pl.BlockSpec((OP, 1), lambda n: (0, 0)),
            ],
            out_specs=pl.BlockSpec((1, OP, lout), lambda n: (n, 0, 0)),
            scratch_shapes=[pltpu.VMEM((K, lout), jnp.bfloat16)],
        ),
        compiler_params=pltpu.CompilerParams(
            dimension_semantics=("parallel",)),
    )(xflat, wconv, bb, wf, fb)

    # Wrapper-side layout plumbing only: rows >= Cout, lanes >= H*Wp and
    # columns >= W of the slab are exact zeros / discarded padding.
    out = out_buf[:, :Cout, :H * Wp].reshape(N, Cout, H, Wp)[:, :, :, :W]
    return out


def ref_forward(x, conv_ws, br_scale, br_bias, w1x1, f_scale, f_bias):
    """Pure-JAX f32 NCHW reference matching the PyTorch module (eval-mode BN)."""
    outs = []
    for i, d in enumerate(DILATIONS):
        y = jax.lax.conv_general_dilated(
            x, conv_ws[i], window_strides=(1, 1),
            padding=[(d, d), (d, d)], rhs_dilation=(d, d),
            dimension_numbers=("NCHW", "HWIO", "NCHW"))
        y = y * br_scale[i][None, :, None, None] + br_bias[i][None, :, None, None]
        outs.append(jnp.maximum(y, 0.0))
    cat = jnp.concatenate(outs, axis=1)
    y = jnp.einsum("nchw,cd->ndhw", cat, w1x1)
    y = y * f_scale[None, :, None, None] + f_bias[None, :, None, None]
    return jnp.maximum(y + x, 0.0)


if __name__ == "__main__":
    N, C, H, W = 2, 4, 16, 16          # in_channels == out_channels == 4
    Cout = C
    key = jax.random.PRNGKey(0)
    keys = jax.random.split(key, 16)

    x = jax.random.normal(keys[0], (N, C, H, W), jnp.float32)   # NCHW

    # branch 3x3 conv weights, HWIO
    conv_ws = [
        0.1 * jax.random.normal(keys[1 + i], (3, 3, C, Cout), jnp.float32)
        for i in range(3)
    ]

    # folded eval-mode BatchNorm params per branch:
    # scale = gamma/sqrt(var+eps), bias = beta - mean*scale
    eps = 1e-5
    gamma = 1.0 + 0.1 * jax.random.normal(keys[5], (3, Cout), jnp.float32)
    beta = 0.1 * jax.random.normal(keys[6], (3, Cout), jnp.float32)
    rmean = 0.05 * jax.random.normal(keys[7], (3, Cout), jnp.float32)
    rvar = 1.0 + 0.1 * jax.random.uniform(keys[8], (3, Cout), jnp.float32)
    br_scale = gamma / jnp.sqrt(rvar + eps)
    br_bias = beta - rmean * br_scale

    # 1x1 conv weight: (3*Cout, Cout)
    w1x1 = 0.1 * jax.random.normal(keys[9], (3 * Cout, Cout), jnp.float32)

    # final folded BN
    gamma_f = 1.0 + 0.1 * jax.random.normal(keys[10], (Cout,), jnp.float32)
    beta_f = 0.1 * jax.random.normal(keys[11], (Cout,), jnp.float32)
    rmean_f = 0.05 * jax.random.normal(keys[12], (Cout,), jnp.float32)
    rvar_f = 1.0 + 0.1 * jax.random.uniform(keys[13], (Cout,), jnp.float32)
    f_scale = gamma_f / jnp.sqrt(rvar_f + eps)
    f_bias = beta_f - rmean_f * f_scale

    out = rfe_forward(x, conv_ws, br_scale, br_bias, w1x1, f_scale, f_bias)
    out = jax.block_until_ready(out)

    ref = ref_forward(x, conv_ws, br_scale, br_bias, w1x1, f_scale, f_bias)
    ref = jax.block_until_ready(ref)

    assert out.shape == (N, Cout, H, W)
    # tolerance sized for bf16 MXU operands vs. the f32 reference
    assert jnp.allclose(out, ref, atol=5e-2, rtol=5e-2), (
        float(jnp.max(jnp.abs(out - ref))))
    print("KERNEL_OK")
</pallas_src>

<mosaic_0001>
module attributes {stable_mosaic.version = 11 : i64} {
  func.func @_rfe_kernel(%arg0: i32, %arg1: memref<1x16x896xbf16, #tpu.memory_space<vmem>>, %arg2: memref<16x432xbf16, #tpu.memory_space<vmem>>, %arg3: memref<16x1xf32, #tpu.memory_space<vmem>>, %arg4: memref<16x16xbf16, #tpu.memory_space<vmem>>, %arg5: memref<16x1xf32, #tpu.memory_space<vmem>>, %arg6: memref<1x16x512xf32, #tpu.memory_space<vmem>>, %arg7: memref<432x512xbf16, #tpu.memory_space<vmem>>) attributes {dimension_semantics = [#tpu.dimension_semantics<parallel>], iteration_bounds = array<i64: 2>, scalar_prefetch = 0 : i64, scratch_operands = 1 : i64, tpu.core_type = #tpu.core_type<tc>, window_params = [{transform_indices = @transform_0, window_bounds = array<i64: 1, 16, 896>}, {pipeline_mode = #tpu.pipeline_mode<synchronous>, transform_indices = @transform_1, window_bounds = array<i64: 16, 432>}, {pipeline_mode = #tpu.pipeline_mode<synchronous>, transform_indices = @transform_2, window_bounds = array<i64: 16, 1>}, {pipeline_mode = #tpu.pipeline_mode<synchronous>, transform_indices = @transform_3, window_bounds = array<i64: 16, 16>}, {pipeline_mode = #tpu.pipeline_mode<synchronous>, transform_indices = @transform_4, window_bounds = array<i64: 16, 1>}, {transform_indices = @transform_5, window_bounds = array<i64: 1, 16, 512>}]} {
    %c0 = arith.constant 0 : index
    %c0_0 = arith.constant 0 : index
    %c135 = arith.constant 135 : index
    %0 = vector.load %arg1[%c0, %c0_0, %c135] : memref<1x16x896xbf16, #tpu.memory_space<vmem>>, vector<1x16x512xbf16>
    %1 = vector.shape_cast %0 : vector<1x16x512xbf16> to vector<16x512xbf16>
    %c0_1 = arith.constant 0 : index
    %c0_2 = arith.constant 0 : index
    %c108 = arith.constant 108 : index
    %2 = vector.load %arg1[%c0_1, %c0_2, %c108] : memref<1x16x896xbf16, #tpu.memory_space<vmem>>, vector<1x16x512xbf16>
    %3 = vector.shape_cast %2 : vector<1x16x512xbf16> to vector<16x512xbf16>
    %c0_3 = arith.constant 0 : index
    %c0_4 = arith.constant 0 : index
    %4 = vector.load %arg7[%c0_3, %c0_4] : memref<432x512xbf16, #tpu.memory_space<vmem>>, vector<16x512xbf16>
    tpu.vector_store %arg7[%c0_3, %c0_4], %3 {strides = array<i32>} : memref<432x512xbf16, #tpu.memory_space<vmem>>, vector<16x512xbf16>,
    %c0_5 = arith.constant 0 : index
    %c0_6 = arith.constant 0 : index
    %c109 = arith.constant 109 : index
    %5 = vector.load %arg1[%c0_5, %c0_6, %c109] : memref<1x16x896xbf16, #tpu.memory_space<vmem>>, vector<1x16x512xbf16>
    %6 = vector.shape_cast %5 : vector<1x16x512xbf16> to vector<16x512xbf16>
    %c16 = arith.constant 16 : index
    %c0_7 = arith.constant 0 : index
    %7 = vector.load %arg7[%c16, %c0_7] : memref<432x512xbf16, #tpu.memory_space<vmem>>, vector<16x512xbf16>
    tpu.vector_store %arg7[%c16, %c0_7], %6 {strides = array<i32>} : memref<432x512xbf16, #tpu.memory_space<vmem>>, vector<16x512xbf16>,
    %c0_8 = arith.constant 0 : index
    %c0_9 = arith.constant 0 : index
    %c110 = arith.constant 110 : index
    %8 = vector.load %arg1[%c0_8, %c0_9, %c110] : memref<1x16x896xbf16, #tpu.memory_space<vmem>>, vector<1x16x512xbf16>
    %9 = vector.shape_cast %8 : vector<1x16x512xbf16> to vector<16x512xbf16>
    %c32 = arith.constant 32 : index
    %c0_10 = arith.constant 0 : index
    %10 = vector.load %arg7[%c32, %c0_10] : memref<432x512xbf16, #tpu.memory_space<vmem>>, vector<16x512xbf16>
    tpu.vector_store %arg7[%c32, %c0_10], %9 {strides = array<i32>} : memref<432x512xbf16, #tpu.memory_space<vmem>>, vector<16x512xbf16>,
    %c0_11 = arith.constant 0 : index
    %c0_12 = arith.constant 0 : index
    %c134 = arith.constant 134 : index
    %11 = vector.load %arg1[%c0_11, %c0_12, %c134] : memref<1x16x896xbf16, #tpu.memory_space<vmem>>, vector<1x16x512xbf16>
    %12 = vector.shape_cast %11 : vector<1x16x512xbf16> to vector<16x512xbf16>
    %c48 = arith.constant 48 : index
    %c0_13 = arith.constant 0 : index
    %13 = vector.load %arg7[%c48, %c0_13] : memref<432x512xbf16, #tpu.memory_space<vmem>>, vector<16x512xbf16>
    tpu.vector_store %arg7[%c48, %c0_13], %12 {strides = array<i32>} : memref<432x512xbf16, #tpu.memory_space<vmem>>, vector<16x512xbf16>,
    %c64 = arith.constant 64 : index
    %c0_14 = arith.constant 0 : index
    %14 = vector.load %arg7[%c64, %c0_14] : memref<432x512xbf16, #tpu.memory_space<vmem>>, vector<16x512xbf16>
    tpu.vector_store %arg7[%c64, %c0_14], %1 {strides = array<i32>} : memref<432x512xbf16, #tpu.memory_space<vmem>>, vector<16x512xbf16>,
    %c0_15 = arith.constant 0 : index
    %c0_16 = arith.constant 0 : index
    %c136 = arith.constant 136 : index
    %15 = vector.load %arg1[%c0_15, %c0_16, %c136] : memref<1x16x896xbf16, #tpu.memory_space<vmem>>, vector<1x16x512xbf16>
    %16 = vector.shape_cast %15 : vector<1x16x512xbf16> to vector<16x512xbf16>
    %c80 = arith.constant 80 : index
    %c0_17 = arith.constant 0 : index
    %17 = vector.load %arg7[%c80, %c0_17] : memref<432x512xbf16, #tpu.memory_space<vmem>>, vector<16x512xbf16>
    tpu.vector_store %arg7[%c80, %c0_17], %16 {strides = array<i32>} : memref<432x512xbf16, #tpu.memory_space<vmem>>, vector<16x512xbf16>,
    %c0_18 = arith.constant 0 : index
    %c0_19 = arith.constant 0 : index
    %c160 = arith.constant 160 : index
    %18 = vector.load %arg1[%c0_18, %c0_19, %c160] : memref<1x16x896xbf16, #tpu.memory_space<vmem>>, vector<1x16x512xbf16>
    %19 = vector.shape_cast %18 : vector<1x16x512xbf16> to vector<16x512xbf16>
    %c96 = arith.constant 96 : index
    %c0_20 = arith.constant 0 : index
    %20 = vector.load %arg7[%c96, %c0_20] : memref<432x512xbf16, #tpu.memory_space<vmem>>, vector<16x512xbf16>
    tpu.vector_store %arg7[%c96, %c0_20], %19 {strides = array<i32>} : memref<432x512xbf16, #tpu.memory_space<vmem>>, vector<16x512xbf16>,
    %c0_21 = arith.constant 0 : index
    %c0_22 = arith.constant 0 : index
    %c161 = arith.constant 161 : index
    %21 = vector.load %arg1[%c0_21, %c0_22, %c161] : memref<1x16x896xbf16, #tpu.memory_space<vmem>>, vector<1x16x512xbf16>
    %22 = vector.shape_cast %21 : vector<1x16x512xbf16> to vector<16x512xbf16>
    %c112 = arith.constant 112 : index
    %c0_23 = arith.constant 0 : index
    %23 = vector.load %arg7[%c112, %c0_23] : memref<432x512xbf16, #tpu.memory_space<vmem>>, vector<16x512xbf16>
    tpu.vector_store %arg7[%c112, %c0_23], %22 {strides = array<i32>} : memref<432x512xbf16, #tpu.memory_space<vmem>>, vector<16x512xbf16>,
    %c0_24 = arith.constant 0 : index
    %c0_25 = arith.constant 0 : index
    %c162 = arith.constant 162 : index
    %24 = vector.load %arg1[%c0_24, %c0_25, %c162] : memref<1x16x896xbf16, #tpu.memory_space<vmem>>, vector<1x16x512xbf16>
    %25 = vector.shape_cast %24 : vector<1x16x512xbf16> to vector<16x512xbf16>
    %c128 = arith.constant 128 : index
    %c0_26 = arith.constant 0 : index
    %26 = vector.load %arg7[%c128, %c0_26] : memref<432x512xbf16, #tpu.memory_space<vmem>>, vector<16x512xbf16>
    tpu.vector_store %arg7[%c128, %c0_26], %25 {strides = array<i32>} : memref<432x512xbf16, #tpu.memory_space<vmem>>, vector<16x512xbf16>,
    %c0_27 = arith.constant 0 : index
    %c0_28 = arith.constant 0 : index
    %c54 = arith.constant 54 : index
    %27 = vector.load %arg1[%c0_27, %c0_28, %c54] : memref<1x16x896xbf16, #tpu.memory_space<vmem>>, vector<1x16x512xbf16>
    %28 = vector.shape_cast %27 : vector<1x16x512xbf16> to vector<16x512xbf16>
    %c144 = arith.constant 144 : index
    %c0_29 = arith.constant 0 : index
    %29 = vector.load %arg7[%c144, %c0_29] : memref<432x512xbf16, #tpu.memory_space<vmem>>, vector<16x512xbf16>
    tpu.vector_store %arg7[%c144, %c0_29], %28 {strides = array<i32>} : memref<432x512xbf16, #tpu.memory_space<vmem>>, vector<16x512xbf16>,
    %c0_30 = arith.constant 0 : index
    %c0_31 = arith.constant 0 : index
    %c57 = arith.constant 57 : index
    %30 = vector.load %arg1[%c0_30, %c0_31, %c57] : memref<1x16x896xbf16, #tpu.memory_space<vmem>>, vector<1x16x512xbf16>
    %31 = vector.shape_cast %30 : vector<1x16x512xbf16> to vector<16x512xbf16>
    %c160_32 = arith.constant 160 : index
    %c0_33 = arith.constant 0 : index
    %32 = vector.load %arg7[%c160_32, %c0_33] : memref<432x512xbf16, #tpu.memory_space<vmem>>, vector<16x512xbf16>
    tpu.vector_store %arg7[%c160_32, %c0_33], %31 {strides = array<i32>} : memref<432x512xbf16, #tpu.memory_space<vmem>>, vector<16x512xbf16>,
    %c0_34 = arith.constant 0 : index
    %c0_35 = arith.constant 0 : index
    %c60 = arith.constant 60 : index
    %33 = vector.load %arg1[%c0_34, %c0_35, %c60] : memref<1x16x896xbf16, #tpu.memory_space<vmem>>, vector<1x16x512xbf16>
    %34 = vector.shape_cast %33 : vector<1x16x512xbf16> to vector<16x512xbf16>
    %c176 = arith.constant 176 : index
    %c0_36 = arith.constant 0 : index
    %35 = vector.load %arg7[%c176, %c0_36] : memref<432x512xbf16, #tpu.memory_space<vmem>>, vector<16x512xbf16>
    tpu.vector_store %arg7[%c176, %c0_36], %34 {strides = array<i32>} : memref<432x512xbf16, #tpu.memory_space<vmem>>, vector<16x512xbf16>,
    %c0_37 = arith.constant 0 : index
    %c0_38 = arith.constant 0 : index
    %c132 = arith.constant 132 : index
    %36 = vector.load %arg1[%c0_37, %c0_38, %c132] : memref<1x16x896xbf16, #tpu.memory_space<vmem>>, vector<1x16x512xbf16>
    %37 = vector.shape_cast %36 : vector<1x16x512xbf16> to vector<16x512xbf16>
    %c192 = arith.constant 192 : index
    %c0_39 = arith.constant 0 : index
    %38 = vector.load %arg7[%c192, %c0_39] : memref<432x512xbf16, #tpu.memory_space<vmem>>, vector<16x512xbf16>
    tpu.vector_store %arg7[%c192, %c0_39], %37 {strides = array<i32>} : memref<432x512xbf16, #tpu.memory_space<vmem>>, vector<16x512xbf16>,
    %c208 = arith.constant 208 : index
    %c0_40 = arith.constant 0 : index
    %39 = vector.load %arg7[%c208, %c0_40] : memref<432x512xbf16, #tpu.memory_space<vmem>>, vector<16x512xbf16>
    tpu.vector_store %arg7[%c208, %c0_40], %1 {strides = array<i32>} : memref<432x512xbf16, #tpu.memory_space<vmem>>, vector<16x512xbf16>,
    %c0_41 = arith.constant 0 : index
    %c0_42 = arith.constant 0 : index
    %c138 = arith.constant 138 : index
    %40 = vector.load %arg1[%c0_41, %c0_42, %c138] : memref<1x16x896xbf16, #tpu.memory_space<vmem>>, vector<1x16x512xbf16>
    %41 = vector.shape_cast %40 : vector<1x16x512xbf16> to vector<16x512xbf16>
    %c224 = arith.constant 224 : index
    %c0_43 = arith.constant 0 : index
    %42 = vector.load %arg7[%c224, %c0_43] : memref<432x512xbf16, #tpu.memory_space<vmem>>, vector<16x512xbf16>
    tpu.vector_store %arg7[%c224, %c0_43], %41 {strides = array<i32>} : memref<432x512xbf16, #tpu.memory_space<vmem>>, vector<16x512xbf16>,
    %c0_44 = arith.constant 0 : index
    %c0_45 = arith.constant 0 : index
    %c210 = arith.constant 210 : index
    %43 = vector.load %arg1[%c0_44, %c0_45, %c210] : memref<1x16x896xbf16, #tpu.memory_space<vmem>>, vector<1x16x512xbf16>
    %44 = vector.shape_cast %43 : vector<1x16x512xbf16> to vector<16x512xbf16>
    %c240 = arith.constant 240 : index
    %c0_46 = arith.constant 0 : index
    %45 = vector.load %arg7[%c240, %c0_46] : memref<432x512xbf16, #tpu.memory_space<vmem>>, vector<16x512xbf16>
    tpu.vector_store %arg7[%c240, %c0_46], %44 {strides = array<i32>} : memref<432x512xbf16, #tpu.memory_space<vmem>>, vector<16x512xbf16>,
    %c0_47 = arith.constant 0 : index
    %c0_48 = arith.constant 0 : index
    %c213 = arith.constant 213 : index
    %46 = vector.load %arg1[%c0_47, %c0_48, %c213] : memref<1x16x896xbf16, #tpu.memory_space<vmem>>, vector<1x16x512xbf16>
    %47 = vector.shape_cast %46 : vector<1x16x512xbf16> to vector<16x512xbf16>
    %c256 = arith.constant 256 : index
    %c0_49 = arith.constant 0 : index
    %48 = vector.load %arg7[%c256, %c0_49] : memref<432x512xbf16, #tpu.memory_space<vmem>>, vector<16x512xbf16>
    tpu.vector_store %arg7[%c256, %c0_49], %47 {strides = array<i32>} : memref<432x512xbf16, #tpu.memory_space<vmem>>, vector<16x512xbf16>,
    %c0_50 = arith.constant 0 : index
    %c0_51 = arith.constant 0 : index
    %c216 = arith.constant 216 : index
    %49 = vector.load %arg1[%c0_50, %c0_51, %c216] : memref<1x16x896xbf16, #tpu.memory_space<vmem>>, vector<1x16x512xbf16>
    %50 = vector.shape_cast %49 : vector<1x16x512xbf16> to vector<16x512xbf16>
    %c272 = arith.constant 272 : index
    %c0_52 = arith.constant 0 : index
    %51 = vector.load %arg7[%c272, %c0_52] : memref<432x512xbf16, #tpu.memory_space<vmem>>, vector<16x512xbf16>
    tpu.vector_store %arg7[%c272, %c0_52], %50 {strides = array<i32>} : memref<432x512xbf16, #tpu.memory_space<vmem>>, vector<16x512xbf16>,
    %c0_53 = arith.constant 0 : index
    %c0_54 = arith.constant 0 : index
    %c0_55 = arith.constant 0 : index
    %52 = vector.load %arg1[%c0_53, %c0_54, %c0_55] : memref<1x16x896xbf16, #tpu.memory_space<vmem>>, vector<1x16x512xbf16>
    %53 = vector.shape_cast %52 : vector<1x16x512xbf16> to vector<16x512xbf16>
    %c288 = arith.constant 288 : index
    %c0_56 = arith.constant 0 : index
    %54 = vector.load %arg7[%c288, %c0_56] : memref<432x512xbf16, #tpu.memory_space<vmem>>, vector<16x512xbf16>
    tpu.vector_store %arg7[%c288, %c0_56], %53 {strides = array<i32>} : memref<432x512xbf16, #tpu.memory_space<vmem>>, vector<16x512xbf16>,
    %c0_57 = arith.constant 0 : index
    %c0_58 = arith.constant 0 : index
    %c5 = arith.constant 5 : index
    %55 = vector.load %arg1[%c0_57, %c0_58, %c5] : memref<1x16x896xbf16, #tpu.memory_space<vmem>>, vector<1x16x512xbf16>
    %56 = vector.shape_cast %55 : vector<1x16x512xbf16> to vector<16x512xbf16>
    %c304 = arith.constant 304 : index
    %c0_59 = arith.constant 0 : index
    %57 = vector.load %arg7[%c304, %c0_59] : memref<432x512xbf16, #tpu.memory_space<vmem>>, vector<16x512xbf16>
    tpu.vector_store %arg7[%c304, %c0_59], %56 {strides = array<i32>} : memref<432x512xbf16, #tpu.memory_space<vmem>>, vector<16x512xbf16>,
    %c0_60 = arith.constant 0 : index
    %c0_61 = arith.constant 0 : index
    %c10 = arith.constant 10 : index
    %58 = vector.load %arg1[%c0_60, %c0_61, %c10] : memref<1x16x896xbf16, #tpu.memory_space<vmem>>, vector<1x16x512xbf16>
    %59 = vector.shape_cast %58 : vector<1x16x512xbf16> to vector<16x512xbf16>
    %c320 = arith.constant 320 : index
    %c0_62 = arith.constant 0 : index
    %60 = vector.load %arg7[%c320, %c0_62] : memref<432x512xbf16, #tpu.memory_space<vmem>>, vector<16x512xbf16>
    tpu.vector_store %arg7[%c320, %c0_62], %59 {strides = array<i32>} : memref<432x512xbf16, #tpu.memory_space<vmem>>, vector<16x512xbf16>,
    %c0_63 = arith.constant 0 : index
    %c0_64 = arith.constant 0 : index
    %c130 = arith.constant 130 : index
    %61 = vector.load %arg1[%c0_63, %c0_64, %c130] : memref<1x16x896xbf16, #tpu.memory_space<vmem>>, vector<1x16x512xbf16>
    %62 = vector.shape_cast %61 : vector<1x16x512xbf16> to vector<16x512xbf16>
    %c336 = arith.constant 336 : index
    %c0_65 = arith.constant 0 : index
    %63 = vector.load %arg7[%c336, %c0_65] : memref<432x512xbf16, #tpu.memory_space<vmem>>, vector<16x512xbf16>
    tpu.vector_store %arg7[%c336, %c0_65], %62 {strides = array<i32>} : memref<432x512xbf16, #tpu.memory_space<vmem>>, vector<16x512xbf16>,
    %c352 = arith.constant 352 : index
    %c0_66 = arith.constant 0 : index
    %64 = vector.load %arg7[%c352, %c0_66] : memref<432x512xbf16, #tpu.memory_space<vmem>>, vector<16x512xbf16>
    tpu.vector_store %arg7[%c352, %c0_66], %1 {strides = array<i32>} : memref<432x512xbf16, #tpu.memory_space<vmem>>, vector<16x512xbf16>,
    %c0_67 = arith.constant 0 : index
    %c0_68 = arith.constant 0 : index
    %c140 = arith.constant 140 : index
    %65 = vector.load %arg1[%c0_67, %c0_68, %c140] : memref<1x16x896xbf16, #tpu.memory_space<vmem>>, vector<1x16x512xbf16>
    %66 = vector.shape_cast %65 : vector<1x16x512xbf16> to vector<16x512xbf16>
    %c368 = arith.constant 368 : index
    %c0_69 = arith.constant 0 : index
    %67 = vector.load %arg7[%c368, %c0_69] : memref<432x512xbf16, #tpu.memory_space<vmem>>, vector<16x512xbf16>
    tpu.vector_store %arg7[%c368, %c0_69], %66 {strides = array<i32>} : memref<432x512xbf16, #tpu.memory_space<vmem>>, vector<16x512xbf16>,
    %c0_70 = arith.constant 0 : index
    %c0_71 = arith.constant 0 : index
    %c260 = arith.constant 260 : index
    %68 = vector.load %arg1[%c0_70, %c0_71, %c260] : memref<1x16x896xbf16, #tpu.memory_space<vmem>>, vector<1x16x512xbf16>
    %69 = vector.shape_cast %68 : vector<1x16x512xbf16> to vector<16x512xbf16>
    %c384 = arith.constant 384 : index
    %c0_72 = arith.constant 0 : index
    %70 = vector.load %arg7[%c384, %c0_72] : memref<432x512xbf16, #tpu.memory_space<vmem>>, vector<16x512xbf16>
    tpu.vector_store %arg7[%c384, %c0_72], %69 {strides = array<i32>} : memref<432x512xbf16, #tpu.memory_space<vmem>>, vector<16x512xbf16>,
    %c0_73 = arith.constant 0 : index
    %c0_74 = arith.constant 0 : index
    %c265 = arith.constant 265 : index
    %71 = vector.load %arg1[%c0_73, %c0_74, %c265] : memref<1x16x896xbf16, #tpu.memory_space<vmem>>, vector<1x16x512xbf16>
    %72 = vector.shape_cast %71 : vector<1x16x512xbf16> to vector<16x512xbf16>
    %c400 = arith.constant 400 : index
    %c0_75 = arith.constant 0 : index
    %73 = vector.load %arg7[%c400, %c0_75] : memref<432x512xbf16, #tpu.memory_space<vmem>>, vector<16x512xbf16>
    tpu.vector_store %arg7[%c400, %c0_75], %72 {strides = array<i32>} : memref<432x512xbf16, #tpu.memory_space<vmem>>, vector<16x512xbf16>,
    %c0_76 = arith.constant 0 : index
    %c0_77 = arith.constant 0 : index
    %c270 = arith.constant 270 : index
    %74 = vector.load %arg1[%c0_76, %c0_77, %c270] : memref<1x16x896xbf16, #tpu.memory_space<vmem>>, vector<1x16x512xbf16>
    %75 = vector.shape_cast %74 : vector<1x16x512xbf16> to vector<16x512xbf16>
    %c416 = arith.constant 416 : index
    %c0_78 = arith.constant 0 : index
    %76 = vector.load %arg7[%c416, %c0_78] : memref<432x512xbf16, #tpu.memory_space<vmem>>, vector<16x512xbf16>
    tpu.vector_store %arg7[%c416, %c0_78], %75 {strides = array<i32>} : memref<432x512xbf16, #tpu.memory_space<vmem>>, vector<16x512xbf16>,
    %c0_79 = arith.constant 0 : index
    %c0_80 = arith.constant 0 : index
    %77 = vector.load %arg2[%c0_79, %c0_80] : memref<16x432xbf16, #tpu.memory_space<vmem>>, vector<16x432xbf16>
    %c0_81 = arith.constant 0 : index
    %c0_82 = arith.constant 0 : index
    %78 = vector.load %arg7[%c0_81, %c0_82] : memref<432x512xbf16, #tpu.memory_space<vmem>>, vector<432x512xbf16>
    %cst = arith.constant dense<0.000000e+00> : vector<16x512xf32>
    %79 = tpu.matmul %77, %78, %cst {dimension_numbers = #tpu.dot_dimension_numbers<[1], [0], [0], [1], [0, 0, 1, 1], [], []>} : vector<16x432xbf16>, vector<432x512xbf16>, vector<16x512xf32> -> vector<16x512xf32>
    %c0_83 = arith.constant 0 : index
    %c0_84 = arith.constant 0 : index
    %80 = vector.load %arg3[%c0_83, %c0_84] : memref<16x1xf32, #tpu.memory_space<vmem>>, vector<16x1xf32>
    %81 = vector.broadcast %80 : vector<16x1xf32> to vector<16x512xf32>
    %82 = arith.addf %79, %81 : vector<16x512xf32>
    %cst_85 = arith.constant 0.000000e+00 : f32
    %83 = vector.broadcast %cst_85 : f32 to vector<16x512xf32>
    %84 = arith.maximumf %82, %83 : vector<16x512xf32>
    %85 = arith.truncf %84 : vector<16x512xf32> to vector<16x512xbf16>
    %c0_86 = arith.constant 0 : index
    %c0_87 = arith.constant 0 : index
    %86 = vector.load %arg4[%c0_86, %c0_87] : memref<16x16xbf16, #tpu.memory_space<vmem>>, vector<16x16xbf16>
    %cst_88 = arith.constant dense<0.000000e+00> : vector<16x512xf32>
    %87 = tpu.matmul %86, %85, %cst_88 {dimension_numbers = #tpu.dot_dimension_numbers<[1], [0], [0], [1], [0, 0, 1, 1], [], []>} : vector<16x16xbf16>, vector<16x512xbf16>, vector<16x512xf32> -> vector<16x512xf32>
    %88 = arith.extf %1 : vector<16x512xbf16> to vector<16x512xf32>
    %c0_89 = arith.constant 0 : index
    %c0_90 = arith.constant 0 : index
    %89 = vector.load %arg5[%c0_89, %c0_90] : memref<16x1xf32, #tpu.memory_space<vmem>>, vector<16x1xf32>
    %90 = vector.broadcast %89 : vector<16x1xf32> to vector<16x512xf32>
    %91 = arith.addf %87, %90 : vector<16x512xf32>
    %92 = arith.addf %91, %88 : vector<16x512xf32>
    %cst_91 = arith.constant 0.000000e+00 : f32
    %93 = vector.broadcast %cst_91 : f32 to vector<16x512xf32>
    %94 = arith.maximumf %92, %93 : vector<16x512xf32>
    %c0_92 = arith.constant 0 : index
    %c0_93 = arith.constant 0 : index
    %c0_94 = arith.constant 0 : index
    %95 = vector.load %arg6[%c0_92, %c0_93, %c0_94] : memref<1x16x512xf32, #tpu.memory_space<vmem>>, vector<1x16x512xf32>
    %96 = vector.shape_cast %95 : vector<1x16x512xf32> to vector<16x512xf32>
    %97 = vector.shape_cast %94 : vector<16x512xf32> to vector<1x16x512xf32>
    tpu.vector_store %arg6[%c0_92, %c0_93, %c0_94], %97 {strides = array<i32>} : memref<1x16x512xf32, #tpu.memory_space<vmem>>, vector<1x16x512xf32>,
    return
  }
  func.func @transform_0(%arg0: i32) -> (i32, i32, i32) {
    %c0_i32 = arith.constant 0 : i32
    %c0_i32_0 = arith.constant 0 : i32
    %c0_i32_1 = arith.constant 0 : i32
    return %arg0, %c0_i32, %c0_i32_0 : i32, i32, i32
  }
  func.func @transform_1(%arg0: i32) -> (i32, i32) {
    %c0_i32 = arith.constant 0 : i32
    %c0_i32_0 = arith.constant 0 : i32
    %c0_i32_1 = arith.constant 0 : i32
    return %c0_i32, %c0_i32_0 : i32, i32
  }
  func.func @transform_2(%arg0: i32) -> (i32, i32) {
    %c0_i32 = arith.constant 0 : i32
    %c0_i32_0 = arith.constant 0 : i32
    %c0_i32_1 = arith.constant 0 : i32
    return %c0_i32, %c0_i32_0 : i32, i32
  }
  func.func @transform_3(%arg0: i32) -> (i32, i32) {
    %c0_i32 = arith.constant 0 : i32
    %c0_i32_0 = arith.constant 0 : i32
    %c0_i32_1 = arith.constant 0 : i32
    return %c0_i32, %c0_i32_0 : i32, i32
  }
  func.func @transform_4(%arg0: i32) -> (i32, i32) {
    %c0_i32 = arith.constant 0 : i32
    %c0_i32_0 = arith.constant 0 : i32
    %c0_i32_1 = arith.constant 0 : i32
    return %c0_i32, %c0_i32_0 : i32, i32
  }
  func.func @transform_5(%arg0: i32) -> (i32, i32, i32) {
    %c0_i32 = arith.constant 0 : i32
    %c0_i32_0 = arith.constant 0 : i32
    %c0_i32_1 = arith.constant 0 : i32
    return %arg0, %c0_i32, %c0_i32_0 : i32, i32, i32
  }
}

</mosaic_0001>

<llo_original>
// kernel: tpu_custom_call.1
$region0: #{tpu_custom_call.1}
  #allocation0 [shape = 'u32[]', space=smem, size = 0x4, offset = 0x4, fixed_abs, tag = 'smem constant byte address 0x4 - core index']
  #allocation1 [shape = 'u32[144,128]{1,0:T(1,128)}', space=vmem, size = 0x12000, scoped, tag = 'internal scratch']
  #allocation2 [shape = 'bf16[432,512]{1,0:T(16,128)(2,1)}', space=vmem, size = 0x6c000, scoped, tag = 'scratch operand']
  %s0 = inlined_call_operand.hbm [shape: bf16[2,16,896], index: 0, kind: input, shape index: {}]
  %s1 = inlined_call_operand.vmem [shape: bf16[16,432], index: 1, kind: input, shape index: {}]
  %s2 = inlined_call_operand.vmem [shape: f32[16,1], index: 2, kind: input, shape index: {}]
  %s3 = inlined_call_operand.vmem [shape: bf16[16,16], index: 3, kind: input, shape index: {}]
  %s4 = inlined_call_operand.vmem [shape: f32[16,1], index: 4, kind: input, shape index: {}]
  %s5 = inlined_call_operand.hbm [shape: f32[2,16,512], index: 5, kind: output, shape index: {}]
  %s6 = sld [smem:[#allocation0]]
  $region57: #{tpu_custom_call.1} parent=0
    _
  %s8 = ssub.s32 1, %s6
  %s9 = scalar_select 0, %s8, %s6
  $region1: #{tpu_custom_call.1} parent=0
    #allocation3 [shape = 'u8[57344]{0}', space=vmem, size = 0xe000, scoped, tag = 'input window, operand 0']
    #allocation4 [shape = 's32[2]{0}', space=sflag, size = 0x8, scoped, tag = 'scoped memory for tpu_custom_call.1']
    #allocation5 [shape = 's32[2]{0}', space=sflag, size = 0x8, scoped, tag = 'scoped memory for tpu_custom_call.1']
    #allocation6 [shape = 'u8[65536]{0}', space=vmem, size = 0x10000, scoped, tag = 'output window, operand 0']
    %10 = vsyncpa [#allocation4], 0
    %s11 = scalar_lea.sflag [#allocation4], 1
    %12 = vsyncpa %s11, 0
    %13 = vsyncpa [#allocation5], 0
    %s14 = scalar_lea.sflag [#allocation5], 1
    %15 = vsyncpa %s14, 0
    loop: start=0, step=1, limit=4
    $region2: #{tpu_custom_call.1} parent=1 // loop_pre_header
      _
    $region3: #{tpu_custom_call.1} parent=1 // loop_header
      %s17 = sphi 0, %s21
      %p18 = scmp.ge.s32.totalorder %s17, 4
      %s27 = sphi 0, %s29
      %s30 = sphi 0, %s27
      %s31 = sphi 0, %s30
      %s47 = sphi 0, %s31
      %s51 = sphi 0, %s51
      %s53 = sphi 0, %s51
      %s54 = sphi 0, %s53
      %s68 = sphi 0, %s54
      %s72 = sphi 0, %s72
      %s74 = sphi 0, %s72
      %s75 = sphi 0, %s74
      %s89 = sphi 0, %s75
      %s93 = sphi 0, %s93
      %s95 = sphi 0, %s93
      %s96 = sphi 0, %s95
      %s110 = sphi 0, %s96
      %s114 = sphi 0, %s114
      %s116 = sphi 0, %s114
      %s117 = sphi 0, %s116
      %s131 = sphi 0, %s117
      %s137 = sphi 0, %s139
      %s140 = sphi 0, %s137
      %s141 = sphi 0, %s140
      %s157 = sphi 0, %s141
    $region4: #{tpu_custom_call.1} parent=1 // loop_header_branch
      %20 = sbr.rel (%p18) target = $region8
    $region5: #{tpu_custom_call.1} parent=1 // loop_body
      %s22 = ssub.s32 %s17, 1
      %s23 = ssub.s32 %s17, 2
      %s24 = sadd.s32 %s17, 1
      %s25 = ssub.s32 %s17, %s24
      %p26 = scmp.eq.s32.totalorder %s25, 0
      %s28 = sadd.s32 %s27, 1
      %s29 = scalar_select %p26, %s27, %s28
      %p32 = pneg %p26
      %p33 = scmp.eq.s32.totalorder %s17, 1
      %p34 = por %p32, %p33
      %p35 = scmp.ne.s32.totalorder %s27, %s30
      %p36 = scmp.eq.s32.totalorder %s17, 0
      %p37 = por %p35, %p36
      %p38 = scmp.ne.s32.totalorder %s27, %s30
      %p39 = scmp.eq.s32.totalorder %s22, 1
      %p40 = por %p38, %p39
      %p41 = scmp.ne.s32.totalorder %s30, %s31
      %p42 = scmp.eq.s32.totalorder %s22, 0
      %p43 = por %p41, %p42
      %p44 = scmp.ne.s32.totalorder %s30, %s31
      %p45 = scmp.eq.s32.totalorder %s23, 1
      %p46 = por %p44, %p45
      %p48 = scmp.ne.s32.totalorder %s31, %s47
      %p49 = scmp.eq.s32.totalorder %s23, 0
      %p50 = por %p48, %p49
      %s52 = sadd.s32 %s51, 1
      %p55 = scmp.eq.s32.totalorder %s17, 1
      %p56 = scmp.ne.s32.totalorder %s51, %s53
      %p57 = scmp.eq.s32.totalorder %s17, 0
      %p58 = por %p56, %p57
      %p59 = scmp.ne.s32.totalorder %s51, %s53
      %p60 = scmp.eq.s32.totalorder %s22, 1
      %p61 = por %p59, %p60
      %p62 = scmp.ne.s32.totalorder %s53, %s54
      %p63 = scmp.eq.s32.totalorder %s22, 0
      %p64 = por %p62, %p63
      %p65 = scmp.ne.s32.totalorder %s53, %s54
      %p66 = scmp.eq.s32.totalorder %s23, 1
      %p67 = por %p65, %p66
      %p69 = scmp.ne.s32.totalorder %s54, %s68
      %p70 = scmp.eq.s32.totalorder %s23, 0
      %p71 = por %p69, %p70
      %s73 = sadd.s32 %s72, 1
      %p76 = scmp.eq.s32.totalorder %s17, 1
      %p77 = scmp.ne.s32.totalorder %s72, %s74
      %p78 = scmp.eq.s32.totalorder %s17, 0
      %p79 = por %p77, %p78
      %p80 = scmp.ne.s32.totalorder %s72, %s74
      %p81 = scmp.eq.s32.totalorder %s22, 1
      %p82 = por %p80, %p81
      %p83 = scmp.ne.s32.totalorder %s74, %s75
      %p84 = scmp.eq.s32.totalorder %s22, 0
      %p85 = por %p83, %p84
      %p86 = scmp.ne.s32.totalorder %s74, %s75
      %p87 = scmp.eq.s32.totalorder %s23, 1
      %p88 = por %p86, %p87
      %p90 = scmp.ne.s32.totalorder %s75, %s89
      %p91 = scmp.eq.s32.totalorder %s23, 0
      %p92 = por %p90, %p91
      %s94 = sadd.s32 %s93, 1
      %p97 = scmp.eq.s32.totalorder %s17, 1
      %p98 = scmp.ne.s32.totalorder %s93, %s95
      %p99 = scmp.eq.s32.totalorder %s17, 0
      %p100 = por %p98, %p99
      %p101 = scmp.ne.s32.totalorder %s93, %s95
      %p102 = scmp.eq.s32.totalorder %s22, 1
      %p103 = por %p101, %p102
      %p104 = scmp.ne.s32.totalorder %s95, %s96
      %p105 = scmp.eq.s32.totalorder %s22, 0
      %p106 = por %p104, %p105
      %p107 = scmp.ne.s32.totalorder %s95, %s96
      %p108 = scmp.eq.s32.totalorder %s23, 1
      %p109 = por %p107, %p108
      %p111 = scmp.ne.s32.totalorder %s96, %s110
      %p112 = scmp.eq.s32.totalorder %s23, 0
      %p113 = por %p111, %p112
      %s115 = sadd.s32 %s114, 1
      %p118 = scmp.eq.s32.totalorder %s17, 1
      %p119 = scmp.ne.s32.totalorder %s114, %s116
      %p120 = scmp.eq.s32.totalorder %s17, 0
      %p121 = por %p119, %p120
      %p122 = scmp.ne.s32.totalorder %s114, %s116
      %p123 = scmp.eq.s32.totalorder %s22, 1
      %p124 = por %p122, %p123
      %p125 = scmp.ne.s32.totalorder %s116, %s117
      %p126 = scmp.eq.s32.totalorder %s22, 0
      %p127 = por %p125, %p126
      %p128 = scmp.ne.s32.totalorder %s116, %s117
      %p129 = scmp.eq.s32.totalorder %s23, 1
      %p130 = por %p128, %p129
      %p132 = scmp.ne.s32.totalorder %s117, %s131
      %p133 = scmp.eq.s32.totalorder %s23, 0
      %p134 = por %p132, %p133
      %s135 = ssub.s32 %s17, %s24
      %p136 = scmp.eq.s32.totalorder %s135, 0
      %s138 = sadd.s32 %s137, 1
      %s139 = scalar_select %p136, %s137, %s138
      %p142 = pneg %p136
      %p143 = scmp.eq.s32.totalorder %s17, 1
      %p144 = por %p142, %p143
      %p145 = scmp.ne.s32.totalorder %s137, %s140
      %p146 = scmp.eq.s32.totalorder %s17, 0
      %p147 = por %p145, %p146
      %p148 = scmp.ne.s32.totalorder %s137, %s140
      %p149 = scmp.eq.s32.totalorder %s22, 1
      %p150 = por %p148, %p149
      %p151 = scmp.ne.s32.totalorder %s140, %s141
      %p152 = scmp.eq.s32.totalorder %s22, 0
      %p153 = por %p151, %p152
      %p154 = scmp.ne.s32.totalorder %s140, %s141
      %p155 = scmp.eq.s32.totalorder %s23, 1
      %p156 = por %p154, %p155
      %p158 = scmp.ne.s32.totalorder %s141, %s157
      %p159 = scmp.eq.s32.totalorder %s23, 0
      %p160 = por %p158, %p159
      %p161 = scmp.le.s32.totalorder 1, %s17
      %p162 = scmp.lt.s32.totalorder %s17, 3
      %p163 = pnand %p161, %p162
      %p164 = pneg %p163
      // Predicated region
      $region9: #{tpu_custom_call.1} parent=5 // pred_check
        _
      $region10: #{tpu_custom_call.1} parent=5 // pred_check_branch
        %166 = sbr.rel (%p163) target = $region12
      $region11: #{tpu_custom_call.1} parent=5 // pred_region
        %s167 = ssub.s32 %s17, 1
        // Predicated region
        $region13: #{tpu_custom_call.1} parent=11 // pred_check
          %p168 = pneg %p64
        $region14: #{tpu_custom_call.1} parent=11 // pred_check_branch
          %170 = sbr.rel (%p168) target = $region16
        $region15: #{tpu_custom_call.1} parent=11 // pred_region
          _
        $region16: #{tpu_custom_call.1} parent=11 // pred_fallthru
          _
        // Predicated region
        $region17: #{tpu_custom_call.1} parent=11 // pred_check
          %p171 = pneg %p85
        $region18: #{tpu_custom_call.1} parent=11 // pred_check_branch
          %173 = sbr.rel (%p171) target = $region20
        $region19: #{tpu_custom_call.1} parent=11 // pred_region
          _
        $region20: #{tpu_custom_call.1} parent=11 // pred_fallthru
          _
        // Predicated region
        $region21: #{tpu_custom_call.1} parent=11 // pred_check
          %p174 = pneg %p106
        $region22: #{tpu_custom_call.1} parent=11 // pred_check_branch
          %176 = sbr.rel (%p174) target = $region24
        $region23: #{tpu_custom_call.1} parent=11 // pred_region
          _
        $region24: #{tpu_custom_call.1} parent=11 // pred_fallthru
          _
        // Predicated region
        $region25: #{tpu_custom_call.1} parent=11 // pred_check
          %p177 = pneg %p127
        $region26: #{tpu_custom_call.1} parent=11 // pred_check_branch
          %179 = sbr.rel (%p177) target = $region28
        $region27: #{tpu_custom_call.1} parent=11 // pred_region
          _
        $region28: #{tpu_custom_call.1} parent=11 // pred_fallthru
          _
      $region12: #{tpu_custom_call.1} parent=5 // pred_fallthru
        _
      %p180 = scmp.lt.s32.totalorder %s17, 2
      // Predicated region
      $region29: #{tpu_custom_call.1} parent=5 // pred_check
        %p181 = pneg %p180
      $region30: #{tpu_custom_call.1} parent=5 // pred_check_branch
        %183 = sbr.rel (%p181) target = $region32
      $region31: #{tpu_custom_call.1} parent=5 // pred_region
        // Predicated region
        $region33: #{tpu_custom_call.1} parent=31 // pred_check
          %p184 = pneg %p37
        $region34: #{tpu_custom_call.1} parent=31 // pred_check_branch
          %186 = sbr.rel (%p184) target = $region36
        $region35: #{tpu_custom_call.1} parent=31 // pred_region
          %s187 = sand.u32 %s27, 1
          %s188 = scalar_lea.sflag [#allocation4], %s187
          %s189 = sand.u32 %s27, 1
          %s190 = smul.addr %s189, 56
          %s191 = scalar_lea.vmem [#allocation3], %s190
          %s193 = ssub.s32 896, 896
          %194 = vsyncadd %s188, %s193
          %s195 = smul.addr %s17, 14
          %s196 = smul.addr %s195, 64
          %s197 = scalar_lea.hbm %s0, %s196
          %s198 = sshll.u32 %s191, 4
          %s199 = int_to_ptr.vmem [resolvable:$true] %s198
          %204 = dma.hbm_to_vmem [thread:$0]  %s197, 896, %s199, %s188, 448, 448, 28
        $region36: #{tpu_custom_call.1} parent=31 // pred_fallthru
          _
      $region32: #{tpu_custom_call.1} parent=5 // pred_fallthru
        _
      %p205 = scmp.le.s32.totalorder 1, %s17
      %p206 = scmp.lt.s32.totalorder %s17, 3
      %p207 = pnand %p205, %p206
      %p208 = pneg %p207
      // Predicated region
      $region37: #{tpu_custom_call.1} parent=5 // pred_check
        _
      $region38: #{tpu_custom_call.1} parent=5 // pred_check_branch
        %210 = sbr.rel (%p207) target = $region40
      $region39: #{tpu_custom_call.1} parent=5 // pred_region
        %s211 = ssub.s32 %s17, 1
        %s212 = sand.u32 %s30, 1
        %s213 = scalar_lea.sflag [#allocation4], %s212
        %s214 = sand.u32 %s30, 1
        %s215 = smul.addr %s214, 56
        %s216 = scalar_lea.vmem [#allocation3], %s215
        // Predicated region
        $region41: #{tpu_custom_call.1} parent=39 // pred_check
          %p217 = pneg %p43
        $region42: #{tpu_custom_call.1} parent=39 // pred_check_branch
          %219 = sbr.rel (%p217) target = $region44
        $region43: #{tpu_custom_call.1} parent=39 // pred_region
          %220 = dma.done %s213, 896
        $region44: #{tpu_custom_call.1} parent=39 // pred_fallthru
          _
        %s221 = sand.u32 %s30, 1
        %s222 = scalar_lea.sflag [#allocation4], %s221
        %s223 = sand.u32 %s30, 1
        %s224 = smul.addr %s223, 56
        %s225 = scalar_lea.vmem [#allocation3], %s224
        %p226 = pneg %p43
        %p227 = pneg %p40
        %p228 = pneg %p64
        %p229 = pneg %p61
        %p230 = pneg %p85
        %p231 = pneg %p82
        %p232 = pneg %p106
        %p233 = pneg %p103
        %p234 = pneg %p127
        %p235 = pneg %p124
        %p236 = pneg %p153
        %p237 = pneg %p150
        %s238 = sand.u32 %s140, 1
        %s239 = scalar_lea.sflag [#allocation5], %s238
        %s240 = sand.u32 %s140, 1
        %s241 = smul.addr %s240, 64
        %s242 = scalar_lea.vmem [#allocation6], %s241
        %v244 = vld [vmem:[%s216 + $0x4] sm:$0xff]
        %v245 = vld [vmem:[%s216 + $0xc] sm:$0xff]
        %v246 = vld [vmem:[%s216 + $0x14] sm:$0xf]
        %v247 = vld [vmem:[%s216 + $0x20] sm:$0xff]
        %v248 = vld [vmem:[%s216 + $0x28] sm:$0xff]
        %v249 = vld [vmem:[%s216 + $0x30] sm:$0xf]
        %v250 = vld [vmem:[%s216] sm:$0xff]
        %v251 = vld [vmem:[%s216 + $0x8] sm:$0xff]
        %v252 = vld [vmem:[%s216 + $0x10] sm:$0xf]
        %v253 = vld [vmem:[%s216 + $0x1c] sm:$0xff]
        %v254 = vld [vmem:[%s216 + $0x24] sm:$0xff]
        %v255 = vld [vmem:[%s216 + $0x2c] sm:$0xf]
        %v262 = vunpack.c.l.b16 %v250
        %v263 = vunpack.c.h.b16 %v250
        %v264 = vunpack.c.l.b16 %v251
        %v265 = vunpack.c.h.b16 %v251
        %v266 = vunpack.c.l.b16 %v252
        %v267 = vunpack.c.l.b16 %v253
        %v268 = vunpack.c.h.b16 %v253
        %v269 = vunpack.c.l.b16 %v254
        %v270 = vunpack.c.h.b16 %v254
        %v271 = vunpack.c.l.b16 %v255
        %v272 = vpack.c.b16 %v267, %v262
        %v273 = vpack.c.b16 %v268, %v263
        %v274 = vpack.c.b16 %v269, %v264
        %v275 = vpack.c.b16 %v270, %v265
        %v276 = vpack.c.b16 %v271, %v266
        %277 = vrot.lane.b32.xlu0 %v272, 20
        %v278 = vpop.permute.xlu0 %277
        %279 = vrot.lane.b32.xlu0 %v273, 20
        %v280 = vpop.permute.xlu0 %279
        %281 = vrot.lane.b32.xlu0 %v274, 20
        %v282 = vpop.permute.xlu0 %281
        %283 = vrot.lane.b32.xlu0 %v275, 20
        %v284 = vpop.permute.xlu0 %283
        %285 = vrot.lane.b32.xlu0 %v276, 20
        %v286 = vpop.permute.xlu0 %285
        %vm287 = vcmask 162816
        %v288 = vsel %vm287, %v278, %v280
        %v289 = vsel %vm287, %v280, %v282
        %v290 = vsel %vm287, %v282, %v284
        %v291 = vsel %vm287, %v284, %v286
        %296 = vst [vmem:[#allocation2] sm:$0xff] %v288
        %297 = vst [vmem:[#allocation2 + $0x8] sm:$0xff] %v289
        %298 = vst [vmem:[#allocation2 + $0x10] sm:$0xff] %v290
        %299 = vst [vmem:[#allocation2 + $0x18] sm:$0xff] %v291
        %v300 = vld [vmem:[%s216] sm:$0xff]
        %v301 = vld [vmem:[%s216 + $0x8] sm:$0xff]
        %v302 = vld [vmem:[%s216 + $0x10] sm:$0xf]
        %v303 = vld [vmem:[%s216 + $0x1c] sm:$0xff]
        %v304 = vld [vmem:[%s216 + $0x24] sm:$0xff]
        %v305 = vld [vmem:[%s216 + $0x2c] sm:$0xf]
        %v312 = vunpack.c.l.b16 %v300
        %v313 = vunpack.c.h.b16 %v300
        %v314 = vunpack.c.l.b16 %v301
        %v315 = vunpack.c.h.b16 %v301
        %v316 = vunpack.c.l.b16 %v302
        %v317 = vunpack.c.l.b16 %v303
        %v318 = vunpack.c.h.b16 %v303
        %v319 = vunpack.c.l.b16 %v304
        %v320 = vunpack.c.h.b16 %v304
        %v321 = vunpack.c.l.b16 %v305
        %v322 = vpack.c.b16 %v317, %v312
        %v323 = vpack.c.b16 %v318, %v313
        %v324 = vpack.c.b16 %v319, %v314
        %v325 = vpack.c.b16 %v320, %v315
        %v326 = vpack.c.b16 %v321, %v316
        %327 = vrot.lane.b32.xlu0 %v322, 19
        %v328 = vpop.permute.xlu0 %327
        %329 = vrot.lane.b32.xlu0 %v323, 19
        %v330 = vpop.permute.xlu0 %329
        %331 = vrot.lane.b32.xlu0 %v324, 19
        %v332 = vpop.permute.xlu0 %331
        %333 = vrot.lane.b32.xlu0 %v325, 19
        %v334 = vpop.permute.xlu0 %333
        %335 = vrot.lane.b32.xlu0 %v326, 19
        %v336 = vpop.permute.xlu0 %335
        %vm337 = vcmask 154624
        %v338 = vsel %vm337, %v328, %v330
        %v339 = vsel %vm337, %v330, %v332
        %v340 = vsel %vm337, %v332, %v334
        %v341 = vsel %vm337, %v334, %v336
        %346 = vst [vmem:[#allocation2 + $0x20] sm:$0xff] %v338
        %347 = vst [vmem:[#allocation2 + $0x28] sm:$0xff] %v339
        %348 = vst [vmem:[#allocation2 + $0x30] sm:$0xff] %v340
        %349 = vst [vmem:[#allocation2 + $0x38] sm:$0xff] %v341
        %v350 = vld [vmem:[%s216] sm:$0xff]
        %v351 = vld [vmem:[%s216 + $0x8] sm:$0xff]
        %v352 = vld [vmem:[%s216 + $0x10] sm:$0xf]
        %v353 = vld [vmem:[%s216 + $0x1c] sm:$0xff]
        %v354 = vld [vmem:[%s216 + $0x24] sm:$0xff]
        %v355 = vld [vmem:[%s216 + $0x2c] sm:$0xf]
        %v362 = vunpack.c.l.b16 %v350
        %v363 = vunpack.c.h.b16 %v350
        %v364 = vunpack.c.l.b16 %v351
        %v365 = vunpack.c.h.b16 %v351
        %v366 = vunpack.c.l.b16 %v352
        %v367 = vunpack.c.l.b16 %v353
        %v368 = vunpack.c.h.b16 %v353
        %v369 = vunpack.c.l.b16 %v354
        %v370 = vunpack.c.h.b16 %v354
        %v371 = vunpack.c.l.b16 %v355
        %v372 = vpack.c.b16 %v367, %v362
        %v373 = vpack.c.b16 %v368, %v363
        %v374 = vpack.c.b16 %v369, %v364
        %v375 = vpack.c.b16 %v370, %v365
        %v376 = vpack.c.b16 %v371, %v366
        %377 = vrot.lane.b32.xlu0 %v372, 18
        %v378 = vpop.permute.xlu0 %377
        %379 = vrot.lane.b32.xlu0 %v373, 18
        %v380 = vpop.permute.xlu0 %379
        %381 = vrot.lane.b32.xlu0 %v374, 18
        %v382 = vpop.permute.xlu0 %381
        %383 = vrot.lane.b32.xlu0 %v375, 18
        %v384 = vpop.permute.xlu0 %383
        %385 = vrot.lane.b32.xlu0 %v376, 18
        %v386 = vpop.permute.xlu0 %385
        %vm387 = vcmask 146432
        %v388 = vsel %vm387, %v378, %v380
        %v389 = vsel %vm387, %v380, %v382
        %v390 = vsel %vm387, %v382, %v384
        %v391 = vsel %vm387, %v384, %v386
        %396 = vst [vmem:[#allocation2 + $0x40] sm:$0xff] %v388
        %397 = vst [vmem:[#allocation2 + $0x48] sm:$0xff] %v389
        %398 = vst [vmem:[#allocation2 + $0x50] sm:$0xff] %v390
        %399 = vst [vmem:[#allocation2 + $0x58] sm:$0xff] %v391
        %v400 = vld [vmem:[%s216 + $0x4] sm:$0xff]
        %v401 = vld [vmem:[%s216 + $0xc] sm:$0xff]
        %v402 = vld [vmem:[%s216 + $0x14] sm:$0xf]
        %v403 = vld [vmem:[%s216 + $0x20] sm:$0xff]
        %v404 = vld [vmem:[%s216 + $0x28] sm:$0xff]
        %v405 = vld [vmem:[%s216 + $0x30] sm:$0xf]
        %v412 = vunpack.c.l.b16 %v400
        %v413 = vunpack.c.h.b16 %v400
        %v414 = vunpack.c.l.b16 %v401
        %v415 = vunpack.c.h.b16 %v401
        %v416 = vunpack.c.l.b16 %v402
        %v417 = vunpack.c.l.b16 %v403
        %v418 = vunpack.c.h.b16 %v403
        %v419 = vunpack.c.l.b16 %v404
        %v420 = vunpack.c.h.b16 %v404
        %v421 = vunpack.c.l.b16 %v405
        %v422 = vpack.c.b16 %v417, %v412
        %v423 = vpack.c.b16 %v418, %v413
        %v424 = vpack.c.b16 %v419, %v414
        %v425 = vpack.c.b16 %v420, %v415
        %v426 = vpack.c.b16 %v421, %v416
        %427 = vrot.lane.b32.xlu0 %v422, 122
        %v428 = vpop.permute.xlu0 %427
        %429 = vrot.lane.b32.xlu0 %v423, 122
        %v430 = vpop.permute.xlu0 %429
        %431 = vrot.lane.b32.xlu0 %v424, 122
        %v432 = vpop.permute.xlu0 %431
        %433 = vrot.lane.b32.xlu0 %v425, 122
        %v434 = vpop.permute.xlu0 %433
        %435 = vrot.lane.b32.xlu0 %v426, 122
        %v436 = vpop.permute.xlu0 %435
        %vm437 = vcmask 998400
        %v438 = vsel %vm437, %v428, %v430
        %v439 = vsel %vm437, %v430, %v432
        %v440 = vsel %vm437, %v432, %v434
        %v441 = vsel %vm437, %v434, %v436
        %446 = vst [vmem:[#allocation2 + $0x60] sm:$0xff] %v438
        %447 = vst [vmem:[#allocation2 + $0x68] sm:$0xff] %v439
        %448 = vst [vmem:[#allocation2 + $0x70] sm:$0xff] %v440
        %449 = vst [vmem:[#allocation2 + $0x78] sm:$0xff] %v441
        %v456 = vunpack.c.l.b16 %v244
        %v457 = vunpack.c.h.b16 %v244
        %v458 = vunpack.c.l.b16 %v245
        %v459 = vunpack.c.h.b16 %v245
        %v460 = vunpack.c.l.b16 %v246
        %v461 = vunpack.c.l.b16 %v247
        %v462 = vunpack.c.h.b16 %v247
        %v463 = vunpack.c.l.b16 %v248
        %v464 = vunpack.c.h.b16 %v248
        %v465 = vunpack.c.l.b16 %v249
        %v466 = vpack.c.b16 %v461, %v456
        %v467 = vpack.c.b16 %v462, %v457
        %v468 = vpack.c.b16 %v463, %v458
        %v469 = vpack.c.b16 %v464, %v459
        %v470 = vpack.c.b16 %v465, %v460
        %471 = vrot.lane.b32.xlu0 %v466, 121
        %v472 = vpop.permute.xlu0 %471
        %473 = vrot.lane.b32.xlu0 %v467, 121
        %v474 = vpop.permute.xlu0 %473
        %475 = vrot.lane.b32.xlu0 %v468, 121
        %v476 = vpop.permute.xlu0 %475
        %477 = vrot.lane.b32.xlu0 %v469, 121
        %v478 = vpop.permute.xlu0 %477
        %479 = vrot.lane.b32.xlu0 %v470, 121
        %v480 = vpop.permute.xlu0 %479
        %vm481 = vcmask 990208
        %v482 = vsel %vm481, %v472, %v474
        %v483 = vsel %vm481, %v474, %v476
        %v484 = vsel %vm481, %v476, %v478
        %v485 = vsel %vm481, %v478, %v480
        %490 = vst [vmem:[#allocation2 + $0x80] sm:$0xff] %v482
        %491 = vst [vmem:[#allocation2 + $0x88] sm:$0xff] %v483
        %492 = vst [vmem:[#allocation2 + $0x90] sm:$0xff] %v484
        %493 = vst [vmem:[#allocation2 + $0x98] sm:$0xff] %v485
        %v494 = vld [vmem:[%s216 + $0x4] sm:$0xff]
        %v495 = vld [vmem:[%s216 + $0xc] sm:$0xff]
        %v496 = vld [vmem:[%s216 + $0x14] sm:$0xf]
        %v497 = vld [vmem:[%s216 + $0x20] sm:$0xff]
        %v498 = vld [vmem:[%s216 + $0x28] sm:$0xff]
        %v499 = vld [vmem:[%s216 + $0x30] sm:$0xf]
        %v506 = vunpack.c.l.b16 %v494
        %v507 = vunpack.c.h.b16 %v494
        %v508 = vunpack.c.l.b16 %v495
        %v509 = vunpack.c.h.b16 %v495
        %v510 = vunpack.c.l.b16 %v496
        %v511 = vunpack.c.l.b16 %v497
        %v512 = vunpack.c.h.b16 %v497
        %v513 = vunpack.c.l.b16 %v498
        %v514 = vunpack.c.h.b16 %v498
        %v515 = vunpack.c.l.b16 %v499
        %v516 = vpack.c.b16 %v511, %v506
        %v517 = vpack.c.b16 %v512, %v507
        %v518 = vpack.c.b16 %v513, %v508
        %v519 = vpack.c.b16 %v514, %v509
        %v520 = vpack.c.b16 %v515, %v510
        %521 = vrot.lane.b32.xlu0 %v516, 120
        %v522 = vpop.permute.xlu0 %521
        %523 = vrot.lane.b32.xlu0 %v517, 120
        %v524 = vpop.permute.xlu0 %523
        %525 = vrot.lane.b32.xlu0 %v518, 120
        %v526 = vpop.permute.xlu0 %525
        %527 = vrot.lane.b32.xlu0 %v519, 120
        %v528 = vpop.permute.xlu0 %527
        %529 = vrot.lane.b32.xlu0 %v520, 120
        %v530 = vpop.permute.xlu0 %529
        %vm531 = vcmask 982016
        %v532 = vsel %vm531, %v522, %v524
        %v533 = vsel %vm531, %v524, %v526
        %v534 = vsel %vm531, %v526, %v528
        %v535 = vsel %vm531, %v528, %v530
        %540 = vst [vmem:[#allocation2 + $0xa0] sm:$0xff] %v532
        %541 = vst [vmem:[#allocation2 + $0xa8] sm:$0xff] %v533
        %542 = vst [vmem:[#allocation2 + $0xb0] sm:$0xff] %v534
        %543 = vst [vmem:[#allocation2 + $0xb8] sm:$0xff] %v535
        %v544 = vld [vmem:[%s216 + $0x4] sm:$0xff]
        %v545 = vld [vmem:[%s216 + $0xc] sm:$0xff]
        %v546 = vld [vmem:[%s216 + $0x14] sm:$0xf]
        %v547 = vld [vmem:[%s216 + $0x20] sm:$0xff]
        %v548 = vld [vmem:[%s216 + $0x28] sm:$0xff]
        %v549 = vld [vmem:[%s216 + $0x30] sm:$0xf]
        %v556 = vunpack.c.l.b16 %v544
        %v557 = vunpack.c.h.b16 %v544
        %v558 = vunpack.c.l.b16 %v545
        %v559 = vunpack.c.h.b16 %v545
        %v560 = vunpack.c.l.b16 %v546
        %v561 = vunpack.c.l.b16 %v547
        %v562 = vunpack.c.h.b16 %v547
        %v563 = vunpack.c.l.b16 %v548
        %v564 = vunpack.c.h.b16 %v548
        %v565 = vunpack.c.l.b16 %v549
        %v566 = vpack.c.b16 %v561, %v556
        %v567 = vpack.c.b16 %v562, %v557
        %v568 = vpack.c.b16 %v563, %v558
        %v569 = vpack.c.b16 %v564, %v559
        %v570 = vpack.c.b16 %v565, %v560
        %571 = vrot.lane.b32.xlu0 %v566, 96
        %v572 = vpop.permute.xlu0 %571
        %573 = vrot.lane.b32.xlu0 %v567, 96
        %v574 = vpop.permute.xlu0 %573
        %575 = vrot.lane.b32.xlu0 %v568, 96
        %v576 = vpop.permute.xlu0 %575
        %577 = vrot.lane.b32.xlu0 %v569, 96
        %v578 = vpop.permute.xlu0 %577
        %579 = vrot.lane.b32.xlu0 %v570, 96
        %v580 = vpop.permute.xlu0 %579
        %vm581 = vcmask 785408
        %v582 = vsel %vm581, %v572, %v574
        %v583 = vsel %vm581, %v574, %v576
        %v584 = vsel %vm581, %v576, %v578
        %v585 = vsel %vm581, %v578, %v580
        %590 = vst [vmem:[#allocation2 + $0xc0] sm:$0xff] %v582
        %591 = vst [vmem:[#allocation2 + $0xc8] sm:$0xff] %v583
        %592 = vst [vmem:[#allocation2 + $0xd0] sm:$0xff] %v584
        %593 = vst [vmem:[#allocation2 + $0xd8] sm:$0xff] %v585
        %v594 = vld [vmem:[%s216 + $0x4] sm:$0xff]
        %v595 = vld [vmem:[%s216 + $0xc] sm:$0xff]
        %v596 = vld [vmem:[%s216 + $0x14] sm:$0xf]
        %v597 = vld [vmem:[%s216 + $0x20] sm:$0xff]
        %v598 = vld [vmem:[%s216 + $0x28] sm:$0xff]
        %v599 = vld [vmem:[%s216 + $0x30] sm:$0xf]
        %v606 = vunpack.c.l.b16 %v594
        %v607 = vunpack.c.h.b16 %v594
        %v608 = vunpack.c.l.b16 %v595
        %v609 = vunpack.c.h.b16 %v595
        %v610 = vunpack.c.l.b16 %v596
        %v611 = vunpack.c.l.b16 %v597
        %v612 = vunpack.c.h.b16 %v597
        %v613 = vunpack.c.l.b16 %v598
        %v614 = vunpack.c.h.b16 %v598
        %v615 = vunpack.c.l.b16 %v599
        %v616 = vpack.c.b16 %v611, %v606
        %v617 = vpack.c.b16 %v612, %v607
        %v618 = vpack.c.b16 %v613, %v608
        %v619 = vpack.c.b16 %v614, %v609
        %v620 = vpack.c.b16 %v615, %v610
        %621 = vrot.lane.b32.xlu0 %v616, 95
        %v622 = vpop.permute.xlu0 %621
        %623 = vrot.lane.b32.xlu0 %v617, 95
        %v624 = vpop.permute.xlu0 %623
        %625 = vrot.lane.b32.xlu0 %v618, 95
        %v626 = vpop.permute.xlu0 %625
        %627 = vrot.lane.b32.xlu0 %v619, 95
        %v628 = vpop.permute.xlu0 %627
        %629 = vrot.lane.b32.xlu0 %v620, 95
        %v630 = vpop.permute.xlu0 %629
        %vm631 = vcmask 777216
        %v632 = vsel %vm631, %v622, %v624
        %v633 = vsel %vm631, %v624, %v626
        %v634 = vsel %vm631, %v626, %v628
        %v635 = vsel %vm631, %v628, %v630
        %640 = vst [vmem:[#allocation2 + $0xe0] sm:$0xff] %v632
        %641 = vst [vmem:[#allocation2 + $0xe8] sm:$0xff] %v633
        %642 = vst [vmem:[#allocation2 + $0xf0] sm:$0xff] %v634
        %643 = vst [vmem:[#allocation2 + $0xf8] sm:$0xff] %v635
        %v644 = vld [vmem:[%s216 + $0x4] sm:$0xff]
        %v645 = vld [vmem:[%s216 + $0xc] sm:$0xff]
        %v646 = vld [vmem:[%s216 + $0x14] sm:$0xf]
        %v647 = vld [vmem:[%s216 + $0x20] sm:$0xff]
        %v648 = vld [vmem:[%s216 + $0x28] sm:$0xff]
        %v649 = vld [vmem:[%s216 + $0x30] sm:$0xf]
        %v656 = vunpack.c.l.b16 %v644
        %v657 = vunpack.c.h.b16 %v644
        %v658 = vunpack.c.l.b16 %v645
        %v659 = vunpack.c.h.b16 %v645
        %v660 = vunpack.c.l.b16 %v646
        %v661 = vunpack.c.l.b16 %v647
        %v662 = vunpack.c.h.b16 %v647
        %v663 = vunpack.c.l.b16 %v648
        %v664 = vunpack.c.h.b16 %v648
        %v665 = vunpack.c.l.b16 %v649
        %v666 = vpack.c.b16 %v661, %v656
        %v667 = vpack.c.b16 %v662, %v657
        %v668 = vpack.c.b16 %v663, %v658
        %v669 = vpack.c.b16 %v664, %v659
        %v670 = vpack.c.b16 %v665, %v660
        %671 = vrot.lane.b32.xlu0 %v666, 94
        %v672 = vpop.permute.xlu0 %671
        %673 = vrot.lane.b32.xlu0 %v667, 94
        %v674 = vpop.permute.xlu0 %673
        %675 = vrot.lane.b32.xlu0 %v668, 94
        %v676 = vpop.permute.xlu0 %675
        %677 = vrot.lane.b32.xlu0 %v669, 94
        %v678 = vpop.permute.xlu0 %677
        %679 = vrot.lane.b32.xlu0 %v670, 94
        %v680 = vpop.permute.xlu0 %679
        %vm681 = vcmask 769024
        %v682 = vsel %vm681, %v672, %v674
        %v683 = vsel %vm681, %v674, %v676
        %v684 = vsel %vm681, %v676, %v678
        %v685 = vsel %vm681, %v678, %v680
        %690 = vst [vmem:[#allocation2 + $0x100] sm:$0xff] %v682
        %691 = vst [vmem:[#allocation2 + $0x108] sm:$0xff] %v683
        %692 = vst [vmem:[#allocation2 + $0x110] sm:$0xff] %v684
        %693 = vst [vmem:[#allocation2 + $0x118] sm:$0xff] %v685
        %v694 = vld [vmem:[%s216] sm:$0xff]
        %v695 = vld [vmem:[%s216 + $0x8] sm:$0xff]
        %v696 = vld [vmem:[%s216 + $0x10] sm:$0xf]
        %v697 = vld [vmem:[%s216 + $0x1c] sm:$0xff]
        %v698 = vld [vmem:[%s216 + $0x24] sm:$0xff]
        %v699 = vld [vmem:[%s216 + $0x2c] sm:$0xf]
        %v706 = vunpack.c.l.b16 %v694
        %v707 = vunpack.c.h.b16 %v694
        %v708 = vunpack.c.l.b16 %v695
        %v709 = vunpack.c.h.b16 %v695
        %v710 = vunpack.c.l.b16 %v696
        %v711 = vunpack.c.l.b16 %v697
        %v712 = vunpack.c.h.b16 %v697
        %v713 = vunpack.c.l.b16 %v698
        %v714 = vunpack.c.h.b16 %v698
        %v715 = vunpack.c.l.b16 %v699
        %v716 = vpack.c.b16 %v711, %v706
        %v717 = vpack.c.b16 %v712, %v707
        %v718 = vpack.c.b16 %v713, %v708
        %v719 = vpack.c.b16 %v714, %v709
        %v720 = vpack.c.b16 %v715, %v710
        %721 = vrot.lane.b32.xlu0 %v716, 74
        %v722 = vpop.permute.xlu0 %721
        %723 = vrot.lane.b32.xlu0 %v717, 74
        %v724 = vpop.permute.xlu0 %723
        %725 = vrot.lane.b32.xlu0 %v718, 74
        %v726 = vpop.permute.xlu0 %725
        %727 = vrot.lane.b32.xlu0 %v719, 74
        %v728 = vpop.permute.xlu0 %727
        %729 = vrot.lane.b32.xlu0 %v720, 74
        %v730 = vpop.permute.xlu0 %729
        %vm731 = vcmask 605184
        %v732 = vsel %vm731, %v722, %v724
        %v733 = vsel %vm731, %v724, %v726
        %v734 = vsel %vm731, %v726, %v728
        %v735 = vsel %vm731, %v728, %v730
        %740 = vst [vmem:[#allocation2 + $0x120] sm:$0xff] %v732
        %741 = vst [vmem:[#allocation2 + $0x128] sm:$0xff] %v733
        %742 = vst [vmem:[#allocation2 + $0x130] sm:$0xff] %v734
        %743 = vst [vmem:[#allocation2 + $0x138] sm:$0xff] %v735
        %v744 = vld [vmem:[%s216] sm:$0xff]
        %v745 = vld [vmem:[%s216 + $0x8] sm:$0xff]
        %v746 = vld [vmem:[%s216 + $0x10] sm:$0xf]
        %v747 = vld [vmem:[%s216 + $0x1c] sm:$0xff]
        %v748 = vld [vmem:[%s216 + $0x24] sm:$0xff]
        %v749 = vld [vmem:[%s216 + $0x2c] sm:$0xf]
        %v756 = vunpack.c.l.b16 %v744
        %v757 = vunpack.c.h.b16 %v744
        %v758 = vunpack.c.l.b16 %v745
        %v759 = vunpack.c.h.b16 %v745
        %v760 = vunpack.c.l.b16 %v746
        %v761 = vunpack.c.l.b16 %v747
        %v762 = vunpack.c.h.b16 %v747
        %v763 = vunpack.c.l.b16 %v748
        %v764 = vunpack.c.h.b16 %v748
        %v765 = vunpack.c.l.b16 %v749
        %v766 = vpack.c.b16 %v761, %v756
        %v767 = vpack.c.b16 %v762, %v757
        %v768 = vpack.c.b16 %v763, %v758
        %v769 = vpack.c.b16 %v764, %v759
        %v770 = vpack.c.b16 %v765, %v760
        %771 = vrot.lane.b32.xlu0 %v766, 71
        %v772 = vpop.permute.xlu0 %771
        %773 = vrot.lane.b32.xlu0 %v767, 71
        %v774 = vpop.permute.xlu0 %773
        %775 = vrot.lane.b32.xlu0 %v768, 71
        %v776 = vpop.permute.xlu0 %775
        %777 = vrot.lane.b32.xlu0 %v769, 71
        %v778 = vpop.permute.xlu0 %777
        %779 = vrot.lane.b32.xlu0 %v770, 71
        %v780 = vpop.permute.xlu0 %779
        %vm781 = vcmask 580608
        %v782 = vsel %vm781, %v772, %v774
        %v783 = vsel %vm781, %v774, %v776
        %v784 = vsel %vm781, %v776, %v778
        %v785 = vsel %vm781, %v778, %v780
        %790 = vst [vmem:[#allocation2 + $0x140] sm:$0xff] %v782
        %791 = vst [vmem:[#allocation2 + $0x148] sm:$0xff] %v783
        %792 = vst [vmem:[#allocation2 + $0x150] sm:$0xff] %v784
        %793 = vst [vmem:[#allocation2 + $0x158] sm:$0xff] %v785
        %v794 = vld [vmem:[%s216] sm:$0xff]
        %v795 = vld [vmem:[%s216 + $0x8] sm:$0xff]
        %v796 = vld [vmem:[%s216 + $0x10] sm:$0xf]
        %v797 = vld [vmem:[%s216 + $0x1c] sm:$0xff]
        %v798 = vld [vmem:[%s216 + $0x24] sm:$0xff]
        %v799 = vld [vmem:[%s216 + $0x2c] sm:$0xf]
        %v806 = vunpack.c.l.b16 %v794
        %v807 = vunpack.c.h.b16 %v794
        %v808 = vunpack.c.l.b16 %v795
        %v809 = vunpack.c.h.b16 %v795
        %v810 = vunpack.c.l.b16 %v796
        %v811 = vunpack.c.l.b16 %v797
        %v812 = vunpack.c.h.b16 %v797
        %v813 = vunpack.c.l.b16 %v798
        %v814 = vunpack.c.h.b16 %v798
        %v815 = vunpack.c.l.b16 %v799
        %v816 = vpack.c.b16 %v811, %v806
        %v817 = vpack.c.b16 %v812, %v807
        %v818 = vpack.c.b16 %v813, %v808
        %v819 = vpack.c.b16 %v814, %v809
        %v820 = vpack.c.b16 %v815, %v810
        %821 = vrot.lane.b32.xlu0 %v816, 68
        %v822 = vpop.permute.xlu0 %821
        %823 = vrot.lane.b32.xlu0 %v817, 68
        %v824 = vpop.permute.xlu0 %823
        %825 = vrot.lane.b32.xlu0 %v818, 68
        %v826 = vpop.permute.xlu0 %825
        %827 = vrot.lane.b32.xlu0 %v819, 68
        %v828 = vpop.permute.xlu0 %827
        %829 = vrot.lane.b32.xlu0 %v820, 68
        %v830 = vpop.permute.xlu0 %829
        %vm831 = vcmask 556032
        %v832 = vsel %vm831, %v822, %v824
        %v833 = vsel %vm831, %v824, %v826
        %v834 = vsel %vm831, %v826, %v828
        %v835 = vsel %vm831, %v828, %v830
        %840 = vst [vmem:[#allocation2 + $0x160] sm:$0xff] %v832
        %841 = vst [vmem:[#allocation2 + $0x168] sm:$0xff] %v833
        %842 = vst [vmem:[#allocation2 + $0x170] sm:$0xff] %v834
        %843 = vst [vmem:[#allocation2 + $0x178] sm:$0xff] %v835
        %v844 = vld [vmem:[%s216 + $0x4] sm:$0xff]
        %v845 = vld [vmem:[%s216 + $0xc] sm:$0xff]
        %v846 = vld [vmem:[%s216 + $0x14] sm:$0xf]
        %v847 = vld [vmem:[%s216 + $0x20] sm:$0xff]
        %v848 = vld [vmem:[%s216 + $0x28] sm:$0xff]
        %v849 = vld [vmem:[%s216 + $0x30] sm:$0xf]
        %v856 = vunpack.c.l.b16 %v844
        %v857 = vunpack.c.h.b16 %v844
        %v858 = vunpack.c.l.b16 %v845
        %v859 = vunpack.c.h.b16 %v845
        %v860 = vunpack.c.l.b16 %v846
        %v861 = vunpack.c.l.b16 %v847
        %v862 = vunpack.c.h.b16 %v847
        %v863 = vunpack.c.l.b16 %v848
        %v864 = vunpack.c.h.b16 %v848
        %v865 = vunpack.c.l.b16 %v849
        %v866 = vpack.c.b16 %v861, %v856
        %v867 = vpack.c.b16 %v862, %v857
        %v868 = vpack.c.b16 %v863, %v858
        %v869 = vpack.c.b16 %v864, %v859
        %v870 = vpack.c.b16 %v865, %v860
        %871 = vrot.lane.b32.xlu0 %v866, 124
        %v872 = vpop.permute.xlu0 %871
        %873 = vrot.lane.b32.xlu0 %v867, 124
        %v874 = vpop.permute.xlu0 %873
        %875 = vrot.lane.b32.xlu0 %v868, 124
        %v876 = vpop.permute.xlu0 %875
        %877 = vrot.lane.b32.xlu0 %v869, 124
        %v878 = vpop.permute.xlu0 %877
        %879 = vrot.lane.b32.xlu0 %v870, 124
        %v880 = vpop.permute.xlu0 %879
        %vm881 = vcmask 1014784
        %v882 = vsel %vm881, %v872, %v874
        %v883 = vsel %vm881, %v874, %v876
        %v884 = vsel %vm881, %v876, %v878
        %v885 = vsel %vm881, %v878, %v880
        %890 = vst [vmem:[#allocation2 + $0x180] sm:$0xff] %v882
        %891 = vst [vmem:[#allocation2 + $0x188] sm:$0xff] %v883
        %892 = vst [vmem:[#allocation2 + $0x190] sm:$0xff] %v884
        %893 = vst [vmem:[#allocation2 + $0x198] sm:$0xff] %v885
        %894 = vst [vmem:[#allocation2 + $0x1a0] sm:$0xff] %v482
        %895 = vst [vmem:[#allocation2 + $0x1a8] sm:$0xff] %v483
        %896 = vst [vmem:[#allocation2 + $0x1b0] sm:$0xff] %v484
        %897 = vst [vmem:[#allocation2 + $0x1b8] sm:$0xff] %v485
        %v898 = vld [vmem:[%s216 + $0x4] sm:$0xff]
        %v899 = vld [vmem:[%s216 + $0xc] sm:$0xff]
        %v900 = vld [vmem:[%s216 + $0x14] sm:$0xf]
        %v901 = vld [vmem:[%s216 + $0x20] sm:$0xff]
        %v902 = vld [vmem:[%s216 + $0x28] sm:$0xff]
        %v903 = vld [vmem:[%s216 + $0x30] sm:$0xf]
        %v910 = vunpack.c.l.b16 %v898
        %v911 = vunpack.c.h.b16 %v898
        %v912 = vunpack.c.l.b16 %v899
        %v913 = vunpack.c.h.b16 %v899
        %v914 = vunpack.c.l.b16 %v900
        %v915 = vunpack.c.l.b16 %v901
        %v916 = vunpack.c.h.b16 %v901
        %v917 = vunpack.c.l.b16 %v902
        %v918 = vunpack.c.h.b16 %v902
        %v919 = vunpack.c.l.b16 %v903
        %v920 = vpack.c.b16 %v915, %v910
        %v921 = vpack.c.b16 %v916, %v911
        %v922 = vpack.c.b16 %v917, %v912
        %v923 = vpack.c.b16 %v918, %v913
        %v924 = vpack.c.b16 %v919, %v914
        %925 = vrot.lane.b32.xlu0 %v920, 118
        %v926 = vpop.permute.xlu0 %925
        %927 = vrot.lane.b32.xlu0 %v921, 118
        %v928 = vpop.permute.xlu0 %927
        %929 = vrot.lane.b32.xlu0 %v922, 118
        %v930 = vpop.permute.xlu0 %929
        %931 = vrot.lane.b32.xlu0 %v923, 118
        %v932 = vpop.permute.xlu0 %931
        %933 = vrot.lane.b32.xlu0 %v924, 118
        %v934 = vpop.permute.xlu0 %933
        %vm935 = vcmask 965632
        %v936 = vsel %vm935, %v926, %v928
        %v937 = vsel %vm935, %v928, %v930
        %v938 = vsel %vm935, %v930, %v932
        %v939 = vsel %vm935, %v932, %v934
        %944 = vst [vmem:[#allocation2 + $0x1c0] sm:$0xff] %v936
        %945 = vst [vmem:[#allocation2 + $0x1c8] sm:$0xff] %v937
        %946 = vst [vmem:[#allocation2 + $0x1d0] sm:$0xff] %v938
        %947 = vst [vmem:[#allocation2 + $0x1d8] sm:$0xff] %v939
        %v948 = vld [vmem:[%s216 + $0x4] sm:$0xff]
        %v949 = vld [vmem:[%s216 + $0xc] sm:$0xff]
        %v950 = vld [vmem:[%s216 + $0x14] sm:$0xf]
        %v951 = vld [vmem:[%s216 + $0x20] sm:$0xff]
        %v952 = vld [vmem:[%s216 + $0x28] sm:$0xff]
        %v953 = vld [vmem:[%s216 + $0x30] sm:$0xf]
        %v960 = vunpack.c.l.b16 %v948
        %v961 = vunpack.c.h.b16 %v948
        %v962 = vunpack.c.l.b16 %v949
        %v963 = vunpack.c.h.b16 %v949
        %v964 = vunpack.c.l.b16 %v950
        %v965 = vunpack.c.l.b16 %v951
        %v966 = vunpack.c.h.b16 %v951
        %v967 = vunpack.c.l.b16 %v952
        %v968 = vunpack.c.h.b16 %v952
        %v969 = vunpack.c.l.b16 %v953
        %v970 = vpack.c.b16 %v965, %v960
        %v971 = vpack.c.b16 %v966, %v961
        %v972 = vpack.c.b16 %v967, %v962
        %v973 = vpack.c.b16 %v968, %v963
        %v974 = vpack.c.b16 %v969, %v964
        %975 = vrot.lane.b32.xlu0 %v970, 46
        %v976 = vpop.permute.xlu0 %975
        %977 = vrot.lane.b32.xlu0 %v971, 46
        %v978 = vpop.permute.xlu0 %977
        %979 = vrot.lane.b32.xlu0 %v972, 46
        %v980 = vpop.permute.xlu0 %979
        %981 = vrot.lane.b32.xlu0 %v973, 46
        %v982 = vpop.permute.xlu0 %981
        %983 = vrot.lane.b32.xlu0 %v974, 46
        %v984 = vpop.permute.xlu0 %983
        %vm985 = vcmask 375808
        %v986 = vsel %vm985, %v976, %v978
        %v987 = vsel %vm985, %v978, %v980
        %v988 = vsel %vm985, %v980, %v982
        %v989 = vsel %vm985, %v982, %v984
        %994 = vst [vmem:[#allocation2 + $0x1e0] sm:$0xff] %v986
        %995 = vst [vmem:[#allocation2 + $0x1e8] sm:$0xff] %v987
        %996 = vst [vmem:[#allocation2 + $0x1f0] sm:$0xff] %v988
        %997 = vst [vmem:[#allocation2 + $0x1f8] sm:$0xff] %v989
        %v998 = vld [vmem:[%s216 + $0x4] sm:$0xff]
        %v999 = vld [vmem:[%s216 + $0xc] sm:$0xff]
        %v1000 = vld [vmem:[%s216 + $0x14] sm:$0xf]
        %v1001 = vld [vmem:[%s216 + $0x20] sm:$0xff]
        %v1002 = vld [vmem:[%s216 + $0x28] sm:$0xff]
        %v1003 = vld [vmem:[%s216 + $0x30] sm:$0xf]
        %v1010 = vunpack.c.l.b16 %v998
        %v1011 = vunpack.c.h.b16 %v998
        %v1012 = vunpack.c.l.b16 %v999
        %v1013 = vunpack.c.h.b16 %v999
        %v1014 = vunpack.c.l.b16 %v1000
        %v1015 = vunpack.c.l.b16 %v1001
        %v1016 = vunpack.c.h.b16 %v1001
        %v1017 = vunpack.c.l.b16 %v1002
        %v1018 = vunpack.c.h.b16 %v1002
        %v1019 = vunpack.c.l.b16 %v1003
        %v1020 = vpack.c.b16 %v1015, %v1010
        %v1021 = vpack.c.b16 %v1016, %v1011
        %v1022 = vpack.c.b16 %v1017, %v1012
        %v1023 = vpack.c.b16 %v1018, %v1013
        %v1024 = vpack.c.b16 %v1019, %v1014
        %1025 = vrot.lane.b32.xlu0 %v1020, 43
        %v1026 = vpop.permute.xlu0 %1025
        %1027 = vrot.lane.b32.xlu0 %v1021, 43
        %v1028 = vpop.permute.xlu0 %1027
        %1029 = vrot.lane.b32.xlu0 %v1022, 43
        %v1030 = vpop.permute.xlu0 %1029
        %1031 = vrot.lane.b32.xlu0 %v1023, 43
        %v1032 = vpop.permute.xlu0 %1031
        %1033 = vrot.lane.b32.xlu0 %v1024, 43
        %v1034 = vpop.permute.xlu0 %1033
        %vm1035 = vcmask 351232
        %v1036 = vsel %vm1035, %v1026, %v1028
        %v1037 = vsel %vm1035, %v1028, %v1030
        %v1038 = vsel %vm1035, %v1030, %v1032
        %v1039 = vsel %vm1035, %v1032, %v1034
        %1044 = vst [vmem:[#allocation2 + $0x200] sm:$0xff] %v1036
        %1045 = vst [vmem:[#allocation2 + $0x208] sm:$0xff] %v1037
        %1046 = vst [vmem:[#allocation2 + $0x210] sm:$0xff] %v1038
        %1047 = vst [vmem:[#allocation2 + $0x218] sm:$0xff] %v1039
        %v1048 = vld [vmem:[%s216 + $0x4] sm:$0xff]
        %v1049 = vld [vmem:[%s216 + $0xc] sm:$0xff]
        %v1050 = vld [vmem:[%s216 + $0x14] sm:$0xf]
        %v1051 = vld [vmem:[%s216 + $0x20] sm:$0xff]
        %v1052 = vld [vmem:[%s216 + $0x28] sm:$0xff]
        %v1053 = vld [vmem:[%s216 + $0x30] sm:$0xf]
        %v1060 = vunpack.c.l.b16 %v1048
        %v1061 = vunpack.c.h.b16 %v1048
        %v1062 = vunpack.c.l.b16 %v1049
        %v1063 = vunpack.c.h.b16 %v1049
        %v1064 = vunpack.c.l.b16 %v1050
        %v1065 = vunpack.c.l.b16 %v1051
        %v1066 = vunpack.c.h.b16 %v1051
        %v1067 = vunpack.c.l.b16 %v1052
        %v1068 = vunpack.c.h.b16 %v1052
        %v1069 = vunpack.c.l.b16 %v1053
        %v1070 = vpack.c.b16 %v1065, %v1060
        %v1071 = vpack.c.b16 %v1066, %v1061
        %v1072 = vpack.c.b16 %v1067, %v1062
        %v1073 = vpack.c.b16 %v1068, %v1063
        %v1074 = vpack.c.b16 %v1069, %v1064
        %1075 = vrot.lane.b32.xlu0 %v1070, 40
        %v1076 = vpop.permute.xlu0 %1075
        %1077 = vrot.lane.b32.xlu0 %v1071, 40
        %v1078 = vpop.permute.xlu0 %1077
        %1079 = vrot.lane.b32.xlu0 %v1072, 40
        %v1080 = vpop.permute.xlu0 %1079
        %1081 = vrot.lane.b32.xlu0 %v1073, 40
        %v1082 = vpop.permute.xlu0 %1081
        %1083 = vrot.lane.b32.xlu0 %v1074, 40
        %v1084 = vpop.permute.xlu0 %1083
        %vm1085 = vcmask 326656
        %v1086 = vsel %vm1085, %v1076, %v1078
        %v1087 = vsel %vm1085, %v1078, %v1080
        %v1088 = vsel %vm1085, %v1080, %v1082
        %v1089 = vsel %vm1085, %v1082, %v1084
        %1094 = vst [vmem:[#allocation2 + $0x220] sm:$0xff] %v1086
        %1095 = vst [vmem:[#allocation2 + $0x228] sm:$0xff] %v1087
        %1096 = vst [vmem:[#allocation2 + $0x230] sm:$0xff] %v1088
        %1097 = vst [vmem:[#allocation2 + $0x238] sm:$0xff] %v1089
        %v1098 = vld [vmem:[%s216] sm:$0xff]
        %v1099 = vld [vmem:[%s216 + $0x8] sm:$0xff]
        %v1100 = vld [vmem:[%s216 + $0x1c] sm:$0xff]
        %v1101 = vld [vmem:[%s216 + $0x24] sm:$0xff]
        %v1106 = vunpack.c.l.b16 %v1098
        %v1107 = vunpack.c.h.b16 %v1098
        %v1108 = vunpack.c.l.b16 %v1099
        %v1109 = vunpack.c.h.b16 %v1099
        %v1110 = vunpack.c.l.b16 %v1100
        %v1111 = vunpack.c.h.b16 %v1100
        %v1112 = vunpack.c.l.b16 %v1101
        %v1113 = vunpack.c.h.b16 %v1101
        %v1114 = vpack.c.b16 %v1110, %v1106
        %v1115 = vpack.c.b16 %v1111, %v1107
        %v1116 = vpack.c.b16 %v1112, %v1108
        %v1117 = vpack.c.b16 %v1113, %v1109
        %1122 = vst [vmem:[#allocation2 + $0x240] sm:$0xff] %v1114
        %1123 = vst [vmem:[#allocation2 + $0x248] sm:$0xff] %v1115
        %1124 = vst [vmem:[#allocation2 + $0x250] sm:$0xff] %v1116
        %1125 = vst [vmem:[#allocation2 + $0x258] sm:$0xff] %v1117
        %v1126 = vld [vmem:[%s216] sm:$0xff]
        %v1127 = vld [vmem:[%s216 + $0x8] sm:$0xff]
        %v1128 = vld [vmem:[%s216 + $0x10] sm:$0xf]
        %v1129 = vld [vmem:[%s216 + $0x1c] sm:$0xff]
        %v1130 = vld [vmem:[%s216 + $0x24] sm:$0xff]
        %v1131 = vld [vmem:[%s216 + $0x2c] sm:$0xf]
        %v1138 = vunpack.c.l.b16 %v1126
        %v1139 = vunpack.c.h.b16 %v1126
        %v1140 = vunpack.c.l.b16 %v1127
        %v1141 = vunpack.c.h.b16 %v1127
        %v1142 = vunpack.c.l.b16 %v1128
        %v1143 = vunpack.c.l.b16 %v1129
        %v1144 = vunpack.c.h.b16 %v1129
        %v1145 = vunpack.c.l.b16 %v1130
        %v1146 = vunpack.c.h.b16 %v1130
        %v1147 = vunpack.c.l.b16 %v1131
        %v1148 = vpack.c.b16 %v1143, %v1138
        %v1149 = vpack.c.b16 %v1144, %v1139
        %v1150 = vpack.c.b16 %v1145, %v1140
        %v1151 = vpack.c.b16 %v1146, %v1141
        %v1152 = vpack.c.b16 %v1147, %v1142
        %1153 = vrot.lane.b32.xlu0 %v1148, 123
        %v1154 = vpop.permute.xlu0 %1153
        %1155 = vrot.lane.b32.xlu0 %v1149, 123
        %v1156 = vpop.permute.xlu0 %1155
        %1157 = vrot.lane.b32.xlu0 %v1150, 123
        %v1158 = vpop.permute.xlu0 %1157
        %1159 = vrot.lane.b32.xlu0 %v1151, 123
        %v1160 = vpop.permute.xlu0 %1159
        %1161 = vrot.lane.b32.xlu0 %v1152, 123
        %v1162 = vpop.permute.xlu0 %1161
        %vm1163 = vcmask 1006592
        %v1164 = vsel %vm1163, %v1154, %v1156
        %v1165 = vsel %vm1163, %v1156, %v1158
        %v1166 = vsel %vm1163, %v1158, %v1160
        %v1167 = vsel %vm1163, %v1160, %v1162
        %1172 = vst [vmem:[#allocation2 + $0x260] sm:$0xff] %v1164
        %1173 = vst [vmem:[#allocation2 + $0x268] sm:$0xff] %v1165
        %1174 = vst [vmem:[#allocation2 + $0x270] sm:$0xff] %v1166
        %1175 = vst [vmem:[#allocation2 + $0x278] sm:$0xff] %v1167
        %v1176 = vld [vmem:[%s216] sm:$0xff]
        %v1177 = vld [vmem:[%s216 + $0x8] sm:$0xff]
        %v1178 = vld [vmem:[%s216 + $0x10] sm:$0xf]
        %v1179 = vld [vmem:[%s216 + $0x1c] sm:$0xff]
        %v1180 = vld [vmem:[%s216 + $0x24] sm:$0xff]
        %v1181 = vld [vmem:[%s216 + $0x2c] sm:$0xf]
        %v1188 = vunpack.c.l.b16 %v1176
        %v1189 = vunpack.c.h.b16 %v1176
        %v1190 = vunpack.c.l.b16 %v1177
        %v1191 = vunpack.c.h.b16 %v1177
        %v1192 = vunpack.c.l.b16 %v1178
        %v1193 = vunpack.c.l.b16 %v1179
        %v1194 = vunpack.c.h.b16 %v1179
        %v1195 = vunpack.c.l.b16 %v1180
        %v1196 = vunpack.c.h.b16 %v1180
        %v1197 = vunpack.c.l.b16 %v1181
        %v1198 = vpack.c.b16 %v1193, %v1188
        %v1199 = vpack.c.b16 %v1194, %v1189
        %v1200 = vpack.c.b16 %v1195, %v1190
        %v1201 = vpack.c.b16 %v1196, %v1191
        %v1202 = vpack.c.b16 %v1197, %v1192
        %1203 = vrot.lane.b32.xlu0 %v1198, 118
        %v1204 = vpop.permute.xlu0 %1203
        %1205 = vrot.lane.b32.xlu0 %v1199, 118
        %v1206 = vpop.permute.xlu0 %1205
        %1207 = vrot.lane.b32.xlu0 %v1200, 118
        %v1208 = vpop.permute.xlu0 %1207
        %1209 = vrot.lane.b32.xlu0 %v1201, 118
        %v1210 = vpop.permute.xlu0 %1209
        %1211 = vrot.lane.b32.xlu0 %v1202, 118
        %v1212 = vpop.permute.xlu0 %1211
        %v1213 = vsel %vm935, %v1204, %v1206
        %v1214 = vsel %vm935, %v1206, %v1208
        %v1215 = vsel %vm935, %v1208, %v1210
        %v1216 = vsel %vm935, %v1210, %v1212
        %1221 = vst [vmem:[#allocation2 + $0x280] sm:$0xff] %v1213
        %1222 = vst [vmem:[#allocation2 + $0x288] sm:$0xff] %v1214
        %1223 = vst [vmem:[#allocation2 + $0x290] sm:$0xff] %v1215
        %1224 = vst [vmem:[#allocation2 + $0x298] sm:$0xff] %v1216
        %v1225 = vld [vmem:[%s216 + $0x4] sm:$0xff]
        %v1226 = vld [vmem:[%s216 + $0xc] sm:$0xff]
        %v1227 = vld [vmem:[%s216 + $0x14] sm:$0xf]
        %v1228 = vld [vmem:[%s216 + $0x20] sm:$0xff]
        %v1229 = vld [vmem:[%s216 + $0x28] sm:$0xff]
        %v1230 = vld [vmem:[%s216 + $0x30] sm:$0xf]
        %v1237 = vunpack.c.l.b16 %v1225
        %v1238 = vunpack.c.h.b16 %v1225
        %v1239 = vunpack.c.l.b16 %v1226
        %v1240 = vunpack.c.h.b16 %v1226
        %v1241 = vunpack.c.l.b16 %v1227
        %v1242 = vunpack.c.l.b16 %v1228
        %v1243 = vunpack.c.h.b16 %v1228
        %v1244 = vunpack.c.l.b16 %v1229
        %v1245 = vunpack.c.h.b16 %v1229
        %v1246 = vunpack.c.l.b16 %v1230
        %v1247 = vpack.c.b16 %v1242, %v1237
        %v1248 = vpack.c.b16 %v1243, %v1238
        %v1249 = vpack.c.b16 %v1244, %v1239
        %v1250 = vpack.c.b16 %v1245, %v1240
        %v1251 = vpack.c.b16 %v1246, %v1241
        %1252 = vrot.lane.b32.xlu0 %v1247, 126
        %v1253 = vpop.permute.xlu0 %1252
        %1254 = vrot.lane.b32.xlu0 %v1248, 126
        %v1255 = vpop.permute.xlu0 %1254
        %1256 = vrot.lane.b32.xlu0 %v1249, 126
        %v1257 = vpop.permute.xlu0 %1256
        %1258 = vrot.lane.b32.xlu0 %v1250, 126
        %v1259 = vpop.permute.xlu0 %1258
        %1260 = vrot.lane.b32.xlu0 %v1251, 126
        %v1261 = vpop.permute.xlu0 %1260
        %vm1262 = vcmask 1031168
        %v1263 = vsel %vm1262, %v1253, %v1255
        %v1264 = vsel %vm1262, %v1255, %v1257
        %v1265 = vsel %vm1262, %v1257, %v1259
        %v1266 = vsel %vm1262, %v1259, %v1261
        %1271 = vst [vmem:[#allocation2 + $0x2a0] sm:$0xff] %v1263
        %1272 = vst [vmem:[#allocation2 + $0x2a8] sm:$0xff] %v1264
        %1273 = vst [vmem:[#allocation2 + $0x2b0] sm:$0xff] %v1265
        %1274 = vst [vmem:[#allocation2 + $0x2b8] sm:$0xff] %v1266
        %1275 = vst [vmem:[#allocation2 + $0x2c0] sm:$0xff] %v482
        %1276 = vst [vmem:[#allocation2 + $0x2c8] sm:$0xff] %v483
        %1277 = vst [vmem:[#allocation2 + $0x2d0] sm:$0xff] %v484
        %1278 = vst [vmem:[#allocation2 + $0x2d8] sm:$0xff] %v485
        %v1279 = vld [vmem:[%s216 + $0x4] sm:$0xff]
        %v1280 = vld [vmem:[%s216 + $0xc] sm:$0xff]
        %v1281 = vld [vmem:[%s216 + $0x14] sm:$0xf]
        %v1282 = vld [vmem:[%s216 + $0x20] sm:$0xff]
        %v1283 = vld [vmem:[%s216 + $0x28] sm:$0xff]
        %v1284 = vld [vmem:[%s216 + $0x30] sm:$0xf]
        %v1291 = vunpack.c.l.b16 %v1279
        %v1292 = vunpack.c.h.b16 %v1279
        %v1293 = vunpack.c.l.b16 %v1280
        %v1294 = vunpack.c.h.b16 %v1280
        %v1295 = vunpack.c.l.b16 %v1281
        %v1296 = vunpack.c.l.b16 %v1282
        %v1297 = vunpack.c.h.b16 %v1282
        %v1298 = vunpack.c.l.b16 %v1283
        %v1299 = vunpack.c.h.b16 %v1283
        %v1300 = vunpack.c.l.b16 %v1284
        %v1301 = vpack.c.b16 %v1296, %v1291
        %v1302 = vpack.c.b16 %v1297, %v1292
        %v1303 = vpack.c.b16 %v1298, %v1293
        %v1304 = vpack.c.b16 %v1299, %v1294
        %v1305 = vpack.c.b16 %v1300, %v1295
        %1306 = vrot.lane.b32.xlu0 %v1301, 116
        %v1307 = vpop.permute.xlu0 %1306
        %1308 = vrot.lane.b32.xlu0 %v1302, 116
        %v1309 = vpop.permute.xlu0 %1308
        %1310 = vrot.lane.b32.xlu0 %v1303, 116
        %v1311 = vpop.permute.xlu0 %1310
        %1312 = vrot.lane.b32.xlu0 %v1304, 116
        %v1313 = vpop.permute.xlu0 %1312
        %1314 = vrot.lane.b32.xlu0 %v1305, 116
        %v1315 = vpop.permute.xlu0 %1314
        %vm1316 = vcmask 949248
        %v1317 = vsel %vm1316, %v1307, %v1309
        %v1318 = vsel %vm1316, %v1309, %v1311
        %v1319 = vsel %vm1316, %v1311, %v1313
        %v1320 = vsel %vm1316, %v1313, %v1315
        %1325 = vst [vmem:[#allocation2 + $0x2e0] sm:$0xff] %v1317
        %1326 = vst [vmem:[#allocation2 + $0x2e8] sm:$0xff] %v1318
        %1327 = vst [vmem:[#allocation2 + $0x2f0] sm:$0xff] %v1319
        %1328 = vst [vmem:[#allocation2 + $0x2f8] sm:$0xff] %v1320
        %v1329 = vld [vmem:[%s216 + $0x8] sm:$0xff]
        %v1330 = vld [vmem:[%s216 + $0x10] sm:$0xff]
        %v1331 = vld [vmem:[%s216 + $0x18] sm:$0xf]
        %v1332 = vld [vmem:[%s216 + $0x24] sm:$0xff]
        %v1333 = vld [vmem:[%s216 + $0x2c] sm:$0xff]
        %v1334 = vld [vmem:[%s216 + $0x34] sm:$0xf]
        %v1341 = vunpack.c.l.b16 %v1329
        %v1342 = vunpack.c.h.b16 %v1329
        %v1343 = vunpack.c.l.b16 %v1330
        %v1344 = vunpack.c.h.b16 %v1330
        %v1345 = vunpack.c.l.b16 %v1331
        %v1346 = vunpack.c.l.b16 %v1332
        %v1347 = vunpack.c.h.b16 %v1332
        %v1348 = vunpack.c.l.b16 %v1333
        %v1349 = vunpack.c.h.b16 %v1333
        %v1350 = vunpack.c.l.b16 %v1334
        %v1351 = vpack.c.b16 %v1346, %v1341
        %v1352 = vpack.c.b16 %v1347, %v1342
        %v1353 = vpack.c.b16 %v1348, %v1343
        %v1354 = vpack.c.b16 %v1349, %v1344
        %v1355 = vpack.c.b16 %v1350, %v1345
        %1356 = vrot.lane.b32.xlu0 %v1351, 124
        %v1357 = vpop.permute.xlu0 %1356
        %1358 = vrot.lane.b32.xlu0 %v1352, 124
        %v1359 = vpop.permute.xlu0 %1358
        %1360 = vrot.lane.b32.xlu0 %v1353, 124
        %v1361 = vpop.permute.xlu0 %1360
        %1362 = vrot.lane.b32.xlu0 %v1354, 124
        %v1363 = vpop.permute.xlu0 %1362
        %1364 = vrot.lane.b32.xlu0 %v1355, 124
        %v1365 = vpop.permute.xlu0 %1364
        %v1366 = vsel %vm881, %v1357, %v1359
        %v1367 = vsel %vm881, %v1359, %v1361
        %v1368 = vsel %vm881, %v1361, %v1363
        %v1369 = vsel %vm881, %v1363, %v1365
        %1374 = vst [vmem:[#allocation2 + $0x300] sm:$0xff] %v1366
        %1375 = vst [vmem:[#allocation2 + $0x308] sm:$0xff] %v1367
        %1376 = vst [vmem:[#allocation2 + $0x310] sm:$0xff] %v1368
        %1377 = vst [vmem:[#allocation2 + $0x318] sm:$0xff] %v1369
        %v1378 = vld [vmem:[%s216 + $0x8] sm:$0xff]
        %v1379 = vld [vmem:[%s216 + $0x10] sm:$0xff]
        %v1380 = vld [vmem:[%s216 + $0x18] sm:$0xf]
        %v1381 = vld [vmem:[%s216 + $0x24] sm:$0xff]
        %v1382 = vld [vmem:[%s216 + $0x2c] sm:$0xff]
        %v1383 = vld [vmem:[%s216 + $0x34] sm:$0xf]
        %v1390 = vunpack.c.l.b16 %v1378
        %v1391 = vunpack.c.h.b16 %v1378
        %v1392 = vunpack.c.l.b16 %v1379
        %v1393 = vunpack.c.h.b16 %v1379
        %v1394 = vunpack.c.l.b16 %v1380
        %v1395 = vunpack.c.l.b16 %v1381
        %v1396 = vunpack.c.h.b16 %v1381
        %v1397 = vunpack.c.l.b16 %v1382
        %v1398 = vunpack.c.h.b16 %v1382
        %v1399 = vunpack.c.l.b16 %v1383
        %v1400 = vpack.c.b16 %v1395, %v1390
        %v1401 = vpack.c.b16 %v1396, %v1391
        %v1402 = vpack.c.b16 %v1397, %v1392
        %v1403 = vpack.c.b16 %v1398, %v1393
        %v1404 = vpack.c.b16 %v1399, %v1394
        %1405 = vrot.lane.b32.xlu0 %v1400, 119
        %v1406 = vpop.permute.xlu0 %1405
        %1407 = vrot.lane.b32.xlu0 %v1401, 119
        %v1408 = vpop.permute.xlu0 %1407
        %1409 = vrot.lane.b32.xlu0 %v1402, 119
        %v1410 = vpop.permute.xlu0 %1409
        %1411 = vrot.lane.b32.xlu0 %v1403, 119
        %v1412 = vpop.permute.xlu0 %1411
        %1413 = vrot.lane.b32.xlu0 %v1404, 119
        %v1414 = vpop.permute.xlu0 %1413
        %vm1415 = vcmask 973824
        %v1416 = vsel %vm1415, %v1406, %v1408
        %v1417 = vsel %vm1415, %v1408, %v1410
        %v1418 = vsel %vm1415, %v1410, %v1412
        %v1419 = vsel %vm1415, %v1412, %v1414
        %1424 = vst [vmem:[#allocation2 + $0x320] sm:$0xff] %v1416
        %1425 = vst [vmem:[#allocation2 + $0x328] sm:$0xff] %v1417
        %1426 = vst [vmem:[#allocation2 + $0x330] sm:$0xff] %v1418
        %1427 = vst [vmem:[#allocation2 + $0x338] sm:$0xff] %v1419
        %v1428 = vld [vmem:[%s216 + $0x8] sm:$0xff]
        %v1429 = vld [vmem:[%s216 + $0x10] sm:$0xff]
        %v1430 = vld [vmem:[%s216 + $0x18] sm:$0xf]
        %v1431 = vld [vmem:[%s216 + $0x24] sm:$0xff]
        %v1432 = vld [vmem:[%s216 + $0x2c] sm:$0xff]
        %v1433 = vld [vmem:[%s216 + $0x34] sm:$0xf]
        %v1440 = vunpack.c.l.b16 %v1428
        %v1441 = vunpack.c.h.b16 %v1428
        %v1442 = vunpack.c.l.b16 %v1429
        %v1443 = vunpack.c.h.b16 %v1429
        %v1444 = vunpack.c.l.b16 %v1430
        %v1445 = vunpack.c.l.b16 %v1431
        %v1446 = vunpack.c.h.b16 %v1431
        %v1447 = vunpack.c.l.b16 %v1432
        %v1448 = vunpack.c.h.b16 %v1432
        %v1449 = vunpack.c.l.b16 %v1433
        %v1450 = vpack.c.b16 %v1445, %v1440
        %v1451 = vpack.c.b16 %v1446, %v1441
        %v1452 = vpack.c.b16 %v1447, %v1442
        %v1453 = vpack.c.b16 %v1448, %v1443
        %v1454 = vpack.c.b16 %v1449, %v1444
        %1455 = vrot.lane.b32.xlu0 %v1450, 114
        %v1456 = vpop.permute.xlu0 %1455
        %1457 = vrot.lane.b32.xlu0 %v1451, 114
        %v1458 = vpop.permute.xlu0 %1457
        %1459 = vrot.lane.b32.xlu0 %v1452, 114
        %v1460 = vpop.permute.xlu0 %1459
        %1461 = vrot.lane.b32.xlu0 %v1453, 114
        %v1462 = vpop.permute.xlu0 %1461
        %1463 = vrot.lane.b32.xlu0 %v1454, 114
        %v1464 = vpop.permute.xlu0 %1463
        %vm1465 = vcmask 932864
        %v1466 = vsel %vm1465, %v1456, %v1458
        %v1467 = vsel %vm1465, %v1458, %v1460
        %v1468 = vsel %vm1465, %v1460, %v1462
        %v1469 = vsel %vm1465, %v1462, %v1464
        %1474 = vst [vmem:[#allocation2 + $0x340] sm:$0xff] %v1466
        %1475 = vst [vmem:[#allocation2 + $0x348] sm:$0xff] %v1467
        %1476 = vst [vmem:[#allocation2 + $0x350] sm:$0xff] %v1468
        %1477 = vst [vmem:[#allocation2 + $0x358] sm:$0xff] %v1469
        %v1478 = vld [vmem:[%s1] sm:$0xff]
        %v1479 = vld [vmem:[%s1 + $0x8] sm:$0xff]
        %v1480 = vld [vmem:[%s1 + $0x10] sm:$0xff]
        %v1481 = vld [vmem:[%s1 + $0x18] sm:$0xff]
        %v1482 = vld [vmem:[#allocation2] sm:$0xff]
        %v1483 = vld [vmem:[#allocation2 + $0x8] sm:$0xff]
        %v1484 = vld [vmem:[#allocation2 + $0x10] sm:$0xff]
        %v1485 = vld [vmem:[#allocation2 + $0x18] sm:$0xff]
        %v1486 = vld [vmem:[#allocation2 + $0x20] sm:$0xff]
        %v1487 = vld [vmem:[#allocation2 + $0x28] sm:$0xff]
        %v1488 = vld [vmem:[#allocation2 + $0x30] sm:$0xff]
        %v1489 = vld [vmem:[#allocation2 + $0x38] sm:$0xff]
        %v1490 = vld [vmem:[#allocation2 + $0x40] sm:$0xff]
        %v1491 = vld [vmem:[#allocation2 + $0x48] sm:$0xff]
        %v1492 = vld [vmem:[#allocation2 + $0x50] sm:$0xff]
        %v1493 = vld [vmem:[#allocation2 + $0x58] sm:$0xff]
        %v1494 = vld [vmem:[#allocation2 + $0x60] sm:$0xff]
        %v1495 = vld [vmem:[#allocation2 + $0x68] sm:$0xff]
        %v1496 = vld [vmem:[#allocation2 + $0x70] sm:$0xff]
        %v1497 = vld [vmem:[#allocation2 + $0x78] sm:$0xff]
        %v1498 = vld [vmem:[#allocation2 + $0x80] sm:$0xff]
        %v1499 = vld [vmem:[#allocation2 + $0x88] sm:$0xff]
        %v1500 = vld [vmem:[#allocation2 + $0x90] sm:$0xff]
        %v1501 = vld [vmem:[#allocation2 + $0x98] sm:$0xff]
        %v1502 = vld [vmem:[#allocation2 + $0xa0] sm:$0xff]
        %v1503 = vld [vmem:[#allocation2 + $0xa8] sm:$0xff]
        %v1504 = vld [vmem:[#allocation2 + $0xb0] sm:$0xff]
        %v1505 = vld [vmem:[#allocation2 + $0xb8] sm:$0xff]
        %v1506 = vld [vmem:[#allocation2 + $0xc0] sm:$0xff]
        %v1507 = vld [vmem:[#allocation2 + $0xc8] sm:$0xff]
        %v1508 = vld [vmem:[#allocation2 + $0xd0] sm:$0xff]
        %v1509 = vld [vmem:[#allocation2 + $0xd8] sm:$0xff]
        %v1510 = vld [vmem:[#allocation2 + $0xe0] sm:$0xff]
        %v1511 = vld [vmem:[#allocation2 + $0xe8] sm:$0xff]
        %v1512 = vld [vmem:[#allocation2 + $0xf0] sm:$0xff]
        %v1513 = vld [vmem:[#allocation2 + $0xf8] sm:$0xff]
        %v1514 = vld [vmem:[#allocation2 + $0x100] sm:$0xff]
        %v1515 = vld [vmem:[#allocation2 + $0x108] sm:$0xff]
        %v1516 = vld [vmem:[#allocation2 + $0x110] sm:$0xff]
        %v1517 = vld [vmem:[#allocation2 + $0x118] sm:$0xff]
        %v1518 = vld [vmem:[#allocation2 + $0x120] sm:$0xff]
        %v1519 = vld [vmem:[#allocation2 + $0x128] sm:$0xff]
        %v1520 = vld [vmem:[#allocation2 + $0x130] sm:$0xff]
        %v1521 = vld [vmem:[#allocation2 + $0x138] sm:$0xff]
        %v1522 = vld [vmem:[#allocation2 + $0x140] sm:$0xff]
        %v1523 = vld [vmem:[#allocation2 + $0x148] sm:$0xff]
        %v1524 = vld [vmem:[#allocation2 + $0x150] sm:$0xff]
        %v1525 = vld [vmem:[#allocation2 + $0x158] sm:$0xff]
        %v1526 = vld [vmem:[#allocation2 + $0x160] sm:$0xff]
        %v1527 = vld [vmem:[#allocation2 + $0x168] sm:$0xff]
        %v1528 = vld [vmem:[#allocation2 + $0x170] sm:$0xff]
        %v1529 = vld [vmem:[#allocation2 + $0x178] sm:$0xff]
        %v1530 = vld [vmem:[#allocation2 + $0x180] sm:$0xff]
        %v1531 = vld [vmem:[#allocation2 + $0x188] sm:$0xff]
        %v1532 = vld [vmem:[#allocation2 + $0x190] sm:$0xff]
        %v1533 = vld [vmem:[#allocation2 + $0x198] sm:$0xff]
        %v1534 = vld [vmem:[#allocation2 + $0x1a0] sm:$0xff]
        %v1535 = vld [vmem:[#allocation2 + $0x1a8] sm:$0xff]
        %v1536 = vld [vmem:[#allocation2 + $0x1b0] sm:$0xff]
        %v1537 = vld [vmem:[#allocation2 + $0x1b8] sm:$0xff]
        %v1538 = vld [vmem:[#allocation2 + $0x1c0] sm:$0xff]
        %v1539 = vld [vmem:[#allocation2 + $0x1c8] sm:$0xff]
        %v1540 = vld [vmem:[#allocation2 + $0x1d0] sm:$0xff]
        %v1541 = vld [vmem:[#allocation2 + $0x1d8] sm:$0xff]
        %v1542 = vld [vmem:[#allocation2 + $0x1e0] sm:$0xff]
        %v1543 = vld [vmem:[#allocation2 + $0x1e8] sm:$0xff]
        %v1544 = vld [vmem:[#allocation2 + $0x1f0] sm:$0xff]
        %v1545 = vld [vmem:[#allocation2 + $0x1f8] sm:$0xff]
        %v1546 = vld [vmem:[#allocation2 + $0x200] sm:$0xff]
        %v1547 = vld [vmem:[#allocation2 + $0x208] sm:$0xff]
        %v1548 = vld [vmem:[#allocation2 + $0x210] sm:$0xff]
        %v1549 = vld [vmem:[#allocation2 + $0x218] sm:$0xff]
        %v1550 = vld [vmem:[#allocation2 + $0x220] sm:$0xff]
        %v1551 = vld [vmem:[#allocation2 + $0x228] sm:$0xff]
        %v1552 = vld [vmem:[#allocation2 + $0x230] sm:$0xff]
        %v1553 = vld [vmem:[#allocation2 + $0x238] sm:$0xff]
        %v1554 = vld [vmem:[#allocation2 + $0x240] sm:$0xff]
        %v1555 = vld [vmem:[#allocation2 + $0x248] sm:$0xff]
        %v1556 = vld [vmem:[#allocation2 + $0x250] sm:$0xff]
        %v1557 = vld [vmem:[#allocation2 + $0x258] sm:$0xff]
        %v1558 = vld [vmem:[#allocation2 + $0x260] sm:$0xff]
        %v1559 = vld [vmem:[#allocation2 + $0x268] sm:$0xff]
        %v1560 = vld [vmem:[#allocation2 + $0x270] sm:$0xff]
        %v1561 = vld [vmem:[#allocation2 + $0x278] sm:$0xff]
        %v1562 = vld [vmem:[#allocation2 + $0x280] sm:$0xff]
        %v1563 = vld [vmem:[#allocation2 + $0x288] sm:$0xff]
        %v1564 = vld [vmem:[#allocation2 + $0x290] sm:$0xff]
        %v1565 = vld [vmem:[#allocation2 + $0x298] sm:$0xff]
        %v1566 = vld [vmem:[#allocation2 + $0x2a0] sm:$0xff]
        %v1567 = vld [vmem:[#allocation2 + $0x2a8] sm:$0xff]
        %v1568 = vld [vmem:[#allocation2 + $0x2b0] sm:$0xff]
        %v1569 = vld [vmem:[#allocation2 + $0x2b8] sm:$0xff]
        %v1570 = vld [vmem:[#allocation2 + $0x2c0] sm:$0xff]
        %v1571 = vld [vmem:[#allocation2 + $0x2c8] sm:$0xff]
        %v1572 = vld [vmem:[#allocation2 + $0x2d0] sm:$0xff]
        %v1573 = vld [vmem:[#allocation2 + $0x2d8] sm:$0xff]
        %v1574 = vld [vmem:[#allocation2 + $0x2e0] sm:$0xff]
        %v1575 = vld [vmem:[#allocation2 + $0x2e8] sm:$0xff]
        %v1576 = vld [vmem:[#allocation2 + $0x2f0] sm:$0xff]
        %v1577 = vld [vmem:[#allocation2 + $0x2f8] sm:$0xff]
        %v1578 = vld [vmem:[#allocation2 + $0x300] sm:$0xff]
        %v1579 = vld [vmem:[#allocation2 + $0x308] sm:$0xff]
        %v1580 = vld [vmem:[#allocation2 + $0x310] sm:$0xff]
        %v1581 = vld [vmem:[#allocation2 + $0x318] sm:$0xff]
        %v1582 = vld [vmem:[#allocation2 + $0x320] sm:$0xff]
        %v1583 = vld [vmem:[#allocation2 + $0x328] sm:$0xff]
        %v1584 = vld [vmem:[#allocation2 + $0x330] sm:$0xff]
        %v1585 = vld [vmem:[#allocation2 + $0x338] sm:$0xff]
        %v1586 = vld [vmem:[#allocation2 + $0x340] sm:$0xff]
        %v1587 = vld [vmem:[#allocation2 + $0x348] sm:$0xff]
        %v1588 = vld [vmem:[#allocation2 + $0x350] sm:$0xff]
        %v1589 = vld [vmem:[#allocation2 + $0x358] sm:$0xff]
        %v1590 = vld [vmem:[%s2] sm:$0xff]
        %v1591 = vld [vmem:[%s2 + $0x8] sm:$0xff]
        %1593 = vset.pattern.permute.xlu0 0
        %1594 = vperm.xlu0 %1593, %v1590
        %v1595 = vpop.permute.xlu0 %1594
        %1598 = vset.pattern.permute.xlu0 0
        %1599 = vperm.xlu0 %1598, %v1591
        %v1600 = vpop.permute.xlu0 %1599
        %v1606 = vunpack.c.l.b16 %v1478
        %v1607 = vunpack.c.h.b16 %v1478
        %v1608 = vunpack.c.l.b16 %v1479
        %v1609 = vunpack.c.h.b16 %v1479
        %v1610 = vunpack.c.l.b16 %v1480
        %v1611 = vunpack.c.h.b16 %v1480
        %v1612 = vunpack.c.l.b16 %v1481
        %v1613 = vunpack.c.h.b16 %v1481
        %v1614 = vpack.c.b16 %v1610, %v1606
        %v1615 = vpack.c.b16 %v1611, %v1607
        %v1616 = vpack.c.b16 %v1612, %v1608
        %v1617 = vpack.c.b16 %v1613, %v1609
        %vm1621 = vcmask 392192
        %v1623 = vsel %vm1621, %v1617, 0
        %1625 = vmatprep.subr.bf16.mxu0 %v1483
        %1626 = vmatpush1.bf16.msra.mxu0 %v1482
        %1627 = vmatprep.subr.bf16.mxu0 %v1487
        %1628 = vmatpush1.bf16.msra.mxu0 %v1486
        %1629 = vmatprep.subr.bf16.mxu0 %v1491
        %1630 = vmatpush1.bf16.msra.mxu0 %v1490
        %1631 = vmatprep.subr.bf16.mxu0 %v1495
        %1632 = vmatpush1.bf16.msra.mxu0 %v1494
        %1633 = vmatprep.subr.bf16.mxu0 %v1499
        %1634 = vmatpush1.bf16.msra.mxu0 %v1498
        %1635 = vmatprep.subr.bf16.mxu0 %v1503
        %1636 = vmatpush1.bf16.msra.mxu0 %v1502
        %1637 = vmatprep.subr.bf16.mxu0 %v1507
        %1638 = vmatpush1.bf16.msra.mxu0 %v1506
        %1639 = vmatprep.subr.bf16.mxu0 %v1511
        %1640 = vmatpush1.bf16.msra.mxu0 %v1510
        %1641 = vmatprep.subr.bf16.mxu0 %v1515
        %1642 = vmatpush1.bf16.msra.mxu0 %v1514
        %1643 = vmatprep.subr.bf16.mxu0 %v1519
        %1644 = vmatpush1.bf16.msra.mxu0 %v1518
        %1645 = vmatprep.subr.bf16.mxu0 %v1523
        %1646 = vmatpush1.bf16.msra.mxu0 %v1522
        %1647 = vmatprep.subr.bf16.mxu0 %v1527
        %1648 = vmatpush1.bf16.msra.mxu0 %v1526
        %1649 = vmatprep.subr.bf16.mxu0 %v1531
        %1650 = vmatpush1.bf16.msra.mxu0 %v1530
        %1651 = vmatprep.subr.bf16.mxu0 %v1535
        %1652 = vmatpush1.bf16.msra.mxu0 %v1534
        %1653 = vmatprep.subr.bf16.mxu0 %v1539
        %1654 = vmatpush1.bf16.msra.mxu0 %v1538
        %1655 = vmatprep.subr.bf16.mxu0 %v1543
        %1656 = vmatpush1.bf16.msra.mxu0 %v1542
        %1657 = vmatprep.mubr.bf16.mxu0 %v1615
        %1658 = vmatmul.mubr.bf16.gmra.mrb[0].mxu0 %v1614
        %v1659 = vpop.f32.mrb[0].mxu0
        %v1660 = vadd.f32 %v1595, %v1659
        %v1661 = vpop.f32.mrb[0].mxu0
        %v1662 = vadd.f32 %v1595, %v1661
        %v1663 = vpop.f32.mrb[0].mxu0
        %v1664 = vadd.f32 %v1600, %v1663
        %v1665 = vpop.f32.mrb[0].mxu0
        %v1666 = vadd.f32 %v1600, %v1665
        %1667 = vdwg.mxu0
        %1668 = vmatprep.subr.bf16.mxu0 %v1547
        %1669 = vmatpush1.bf16.msra.mxu0 %v1546
        %1670 = vmatprep.subr.bf16.mxu0 %v1551
        %1671 = vmatpush1.bf16.msra.mxu0 %v1550
        %1672 = vmatprep.subr.bf16.mxu0 %v1555
        %1673 = vmatpush1.bf16.msra.mxu0 %v1554
        %1674 = vmatprep.subr.bf16.mxu0 %v1559
        %1675 = vmatpush1.bf16.msra.mxu0 %v1558
        %1676 = vmatprep.subr.bf16.mxu0 %v1563
        %1677 = vmatpush1.bf16.msra.mxu0 %v1562
        %1678 = vmatprep.subr.bf16.mxu0 %v1567
        %1679 = vmatpush1.bf16.msra.mxu0 %v1566
        %1680 = vmatprep.subr.bf16.mxu0 %v1571
        %1681 = vmatpush1.bf16.msra.mxu0 %v1570
        %1682 = vmatprep.subr.bf16.mxu0 %v1575
        %1683 = vmatpush1.bf16.msra.mxu0 %v1574
        %1684 = vmatprep.subr.bf16.mxu0 %v1579
        %1685 = vmatpush1.bf16.msra.mxu0 %v1578
        %1686 = vmatprep.subr.bf16.mxu0 %v1583
        %1687 = vmatpush1.bf16.msra.mxu0 %v1582
        %1688 = vmatprep.subr.bf16.mxu0 %v1587
        %1689 = vmatpush1.bf16.msra.mxu0 %v1586
        %1690 = vmatprep.subr.bf16.mxu0 0
        %1691 = vmatpush1.bf16.msra.mxu0 0
        %1692 = vmatprep.subr.bf16.mxu0 0
        %1693 = vmatpush1.bf16.msra.mxu0 0
        %1694 = vmatprep.subr.bf16.mxu0 0
        %1695 = vmatpush1.bf16.msra.mxu0 0
        %1696 = vmatprep.subr.bf16.mxu0 0
        %1697 = vmatpush1.bf16.msra.mxu0 0
        %1698 = vmatprep.subr.bf16.mxu0 0
        %1699 = vmatpush1.bf16.msra.mxu0 0
        %1700 = vmatprep.mubr.bf16.mxu0 %v1623
        %1701 = vmatmul.mubr.bf16.gmra.mrb[0].mxu0 %v1616
        %v1702 = vpop.f32.mrb[0].mxu0
        %v1703 = vadd.f32 %v1660, %v1702
        %v1704 = vpop.f32.mrb[0].mxu0
        %v1705 = vadd.f32 %v1662, %v1704
        %v1706 = vpop.f32.mrb[0].mxu0
        %v1707 = vadd.f32 %v1664, %v1706
        %v1708 = vpop.f32.mrb[0].mxu0
        %v1709 = vadd.f32 %v1666, %v1708
        %1710 = vdwg.mxu0
        %1711 = vmatprep.subr.bf16.mxu0 %v1485
        %1712 = vmatpush1.bf16.msra.mxu0 %v1484
        %1713 = vmatprep.subr.bf16.mxu0 %v1489
        %1714 = vmatpush1.bf16.msra.mxu0 %v1488
        %1715 = vmatprep.subr.bf16.mxu0 %v1493
        %1716 = vmatpush1.bf16.msra.mxu0 %v1492
        %1717 = vmatprep.subr.bf16.mxu0 %v1497
        %1718 = vmatpush1.bf16.msra.mxu0 %v1496
        %1719 = vmatprep.subr.bf16.mxu0 %v1501
        %1720 = vmatpush1.bf16.msra.mxu0 %v1500
        %1721 = vmatprep.subr.bf16.mxu0 %v1505
        %1722 = vmatpush1.bf16.msra.mxu0 %v1504
        %1723 = vmatprep.subr.bf16.mxu0 %v1509
        %1724 = vmatpush1.bf16.msra.mxu0 %v1508
        %1725 = vmatprep.subr.bf16.mxu0 %v1513
        %1726 = vmatpush1.bf16.msra.mxu0 %v1512
        %1727 = vmatprep.subr.bf16.mxu0 %v1517
        %1728 = vmatpush1.bf16.msra.mxu0 %v1516
        %1729 = vmatprep.subr.bf16.mxu0 %v1521
        %1730 = vmatpush1.bf16.msra.mxu0 %v1520
        %1731 = vmatprep.subr.bf16.mxu0 %v1525
        %1732 = vmatpush1.bf16.msra.mxu0 %v1524
        %1733 = vmatprep.subr.bf16.mxu0 %v1529
        %1734 = vmatpush1.bf16.msra.mxu0 %v1528
        %1735 = vmatprep.subr.bf16.mxu0 %v1533
        %1736 = vmatpush1.bf16.msra.mxu0 %v1532
        %1737 = vmatprep.subr.bf16.mxu0 %v1537
        %1738 = vmatpush1.bf16.msra.mxu0 %v1536
        %1739 = vmatprep.subr.bf16.mxu0 %v1541
        %1740 = vmatpush1.bf16.msra.mxu0 %v1540
        %1741 = vmatprep.subr.bf16.mxu0 %v1545
        %1742 = vmatpush1.bf16.msra.mxu0 %v1544
        %1743 = vmatprep.mubr.bf16.mxu0 %v1615
        %1744 = vmatmul.mubr.bf16.gmra.mrb[0].mxu0 %v1614
        %v1745 = vpop.f32.mrb[0].mxu0
        %v1746 = vadd.f32 %v1595, %v1745
        %v1747 = vpop.f32.mrb[0].mxu0
        %v1748 = vadd.f32 %v1595, %v1747
        %v1749 = vpop.f32.mrb[0].mxu0
        %v1750 = vadd.f32 %v1600, %v1749
        %v1751 = vpop.f32.mrb[0].mxu0
        %v1752 = vadd.f32 %v1600, %v1751
        %1753 = vdwg.mxu0
        %1754 = vmatprep.subr.bf16.mxu0 %v1549
        %1755 = vmatpush1.bf16.msra.mxu0 %v1548
        %1756 = vmatprep.subr.bf16.mxu0 %v1553
        %1757 = vmatpush1.bf16.msra.mxu0 %v1552
        %1758 = vmatprep.subr.bf16.mxu0 %v1557
        %1759 = vmatpush1.bf16.msra.mxu0 %v1556
        %1760 = vmatprep.subr.bf16.mxu0 %v1561
        %1761 = vmatpush1.bf16.msra.mxu0 %v1560
        %1762 = vmatprep.subr.bf16.mxu0 %v1565
        %1763 = vmatpush1.bf16.msra.mxu0 %v1564
        %1764 = vmatprep.subr.bf16.mxu0 %v1569
        %1765 = vmatpush1.bf16.msra.mxu0 %v1568
        %1766 = vmatprep.subr.bf16.mxu0 %v1573
        %1767 = vmatpush1.bf16.msra.mxu0 %v1572
        %1768 = vmatprep.subr.bf16.mxu0 %v1577
        %1769 = vmatpush1.bf16.msra.mxu0 %v1576
        %1770 = vmatprep.subr.bf16.mxu0 %v1581
        %1771 = vmatpush1.bf16.msra.mxu0 %v1580
        %1772 = vmatprep.subr.bf16.mxu0 %v1585
        %1773 = vmatpush1.bf16.msra.mxu0 %v1584
        %1774 = vmatprep.subr.bf16.mxu0 %v1589
        %1775 = vmatpush1.bf16.msra.mxu0 %v1588
        %1776 = vmatprep.subr.bf16.mxu0 0
        %1777 = vmatpush1.bf16.msra.mxu0 0
        %1778 = vmatprep.subr.bf16.mxu0 0
        %1779 = vmatpush1.bf16.msra.mxu0 0
        %1780 = vmatprep.subr.bf16.mxu0 0
        %1781 = vmatpush1.bf16.msra.mxu0 0
        %1782 = vmatprep.subr.bf16.mxu0 0
        %1783 = vmatpush1.bf16.msra.mxu0 0
        %1784 = vmatprep.subr.bf16.mxu0 0
        %1785 = vmatpush1.bf16.msra.mxu0 0
        %1786 = vmatprep.mubr.bf16.mxu0 %v1623
        %1787 = vmatmul.mubr.bf16.gmra.mrb[0].mxu0 %v1616
        %v1788 = vpop.f32.mrb[0].mxu0
        %v1789 = vadd.f32 %v1746, %v1788
        %v1790 = vpop.f32.mrb[0].mxu0
        %v1791 = vadd.f32 %v1748, %v1790
        %v1792 = vpop.f32.mrb[0].mxu0
        %v1793 = vadd.f32 %v1750, %v1792
        %v1794 = vpop.f32.mrb[0].mxu0
        %v1795 = vadd.f32 %v1752, %v1794
        %1796 = vdwg.mxu0
        %v1797 = vmax.f32 %v1703, 0.0
        %v1798 = vmax.f32 %v1705, 0.0
        %v1799 = vmax.f32 %v1789, 0.0
        %v1800 = vmax.f32 %v1791, 0.0
        %v1801 = vmax.f32 %v1707, 0.0
        %v1802 = vmax.f32 %v1709, 0.0
        %v1803 = vmax.f32 %v1793, 0.0
        %v1804 = vmax.f32 %v1795, 0.0
        %v1805 = vpack.c.bf16 %v1801, %v1797
        %v1806 = vpack.c.bf16 %v1802, %v1798
        %v1807 = vpack.c.bf16 %v1803, %v1799
        %v1808 = vpack.c.bf16 %v1804, %v1800
        %v1809 = vld [vmem:[%s3] sm:$0xf]
        %v1810 = vld [vmem:[%s3 + $0x4] sm:$0xf]
        %v1811 = vunpack.c.l.bf16 %v244
        %v1812 = vunpack.c.h.bf16 %v244
        %v1813 = vunpack.c.l.bf16 %v245
        %v1814 = vunpack.c.h.bf16 %v245
        %v1815 = vunpack.c.l.bf16 %v246
        %v1816 = vunpack.c.l.bf16 %v247
        %v1817 = vunpack.c.h.bf16 %v247
        %v1818 = vunpack.c.l.bf16 %v248
        %v1819 = vunpack.c.h.bf16 %v248
        %v1820 = vunpack.c.l.bf16 %v249
        %v1821 = vld [vmem:[%s4] sm:$0xff]
        %v1822 = vld [vmem:[%s4 + $0x8] sm:$0xff]
        %1824 = vset.pattern.permute.xlu0 0
        %1825 = vperm.xlu0 %1824, %v1821
        %v1826 = vpop.permute.xlu0 %1825
        %1829 = vset.pattern.permute.xlu0 0
        %1830 = vperm.xlu0 %1829, %v1822
        %v1831 = vpop.permute.xlu0 %1830
        %v1835 = vunpack.c.l.b16 %v1809
        %v1836 = vunpack.c.l.b16 %v1810
        %v1837 = vpack.c.b16 %v1836, %v1835
        %vm1838 = vcmask 130048
        %v1840 = vsel %vm1838, %v1837, 0
        %1842 = vmatprep.subr.bf16.mxu0 %v1806
        %1843 = vmatpush1.bf16.msra.mxu0 %v1805
        %1844 = vmatprep.subr.bf16.mxu0 0
        %1845 = vmatpush1.bf16.msra.mxu0 0
        %1846 = vmatprep.subr.bf16.mxu0 0
        %1847 = vmatpush1.bf16.msra.mxu0 0
        %1848 = vmatprep.subr.bf16.mxu0 0
        %1849 = vmatpush1.bf16.msra.mxu0 0
        %1850 = vmatprep.subr.bf16.mxu0 0
        %1851 = vmatpush1.bf16.msra.mxu0 0
        %1852 = vmatprep.subr.bf16.mxu0 0
        %1853 = vmatpush1.bf16.msra.mxu0 0
        %1854 = vmatprep.subr.bf16.mxu0 0
        %1855 = vmatpush1.bf16.msra.mxu0 0
        %1856 = vmatprep.subr.bf16.mxu0 0
        %1857 = vmatpush1.bf16.msra.mxu0 0
        %1858 = vmatprep.subr.bf16.mxu0 0
        %1859 = vmatpush1.bf16.msra.mxu0 0
        %1860 = vmatprep.subr.bf16.mxu0 0
        %1861 = vmatpush1.bf16.msra.mxu0 0
        %1862 = vmatprep.subr.bf16.mxu0 0
        %1863 = vmatpush1.bf16.msra.mxu0 0
        %1864 = vmatprep.subr.bf16.mxu0 0
        %1865 = vmatpush1.bf16.msra.mxu0 0
        %1866 = vmatprep.subr.bf16.mxu0 0
        %1867 = vmatpush1.bf16.msra.mxu0 0
        %1868 = vmatprep.subr.bf16.mxu0 0
        %1869 = vmatpush1.bf16.msra.mxu0 0
        %1870 = vmatprep.subr.bf16.mxu0 0
        %1871 = vmatpush1.bf16.msra.mxu0 0
        %1872 = vmatprep.subr.bf16.mxu0 0
        %1873 = vmatpush1.bf16.msra.mxu0 0
        %1874 = vmatprep.mubr.bf16.mxu0 0
        %1875 = vmatmul.mubr.bf16.gmra.mrb[0].mxu0 %v1840
        %v1876 = vpop.f32.mrb[0].mxu0
        %v1877 = vadd.f32 %v1826, %v1876
        %v1878 = vpop.f32.mrb[0].mxu0
        %v1879 = vadd.f32 %v1826, %v1878
        %v1880 = vpop.f32.mrb[0].mxu0
        %v1881 = vadd.f32 %v1831, %v1880
        %v1882 = vpop.f32.mrb[0].mxu0
        %v1883 = vadd.f32 %v1831, %v1882
        %1884 = vdwg.mxu0
        %1885 = vmatprep.subr.bf16.mxu0 %v1808
        %1886 = vmatpush1.bf16.msra.mxu0 %v1807
        %1887 = vmatprep.subr.bf16.mxu0 0
        %1888 = vmatpush1.bf16.msra.mxu0 0
        %1889 = vmatprep.subr.bf16.mxu0 0
        %1890 = vmatpush1.bf16.msra.mxu0 0
        %1891 = vmatprep.subr.bf16.mxu0 0
        %1892 = vmatpush1.bf16.msra.mxu0 0
        %1893 = vmatprep.subr.bf16.mxu0 0
        %1894 = vmatpush1.bf16.msra.mxu0 0
        %1895 = vmatprep.subr.bf16.mxu0 0
        %1896 = vmatpush1.bf16.msra.mxu0 0
        %1897 = vmatprep.subr.bf16.mxu0 0
        %1898 = vmatpush1.bf16.msra.mxu0 0
        %1899 = vmatprep.subr.bf16.mxu0 0
        %1900 = vmatpush1.bf16.msra.mxu0 0
        %1901 = vmatprep.subr.bf16.mxu0 0
        %1902 = vmatpush1.bf16.msra.mxu0 0
        %1903 = vmatprep.subr.bf16.mxu0 0
        %1904 = vmatpush1.bf16.msra.mxu0 0
        %1905 = vmatprep.subr.bf16.mxu0 0
        %1906 = vmatpush1.bf16.msra.mxu0 0
        %1907 = vmatprep.subr.bf16.mxu0 0
        %1908 = vmatpush1.bf16.msra.mxu0 0
        %1909 = vmatprep.subr.bf16.mxu0 0
        %1910 = vmatpush1.bf16.msra.mxu0 0
        %1911 = vmatprep.subr.bf16.mxu0 0
        %1912 = vmatpush1.bf16.msra.mxu0 0
        %1913 = vmatprep.subr.bf16.mxu0 0
        %1914 = vmatpush1.bf16.msra.mxu0 0
        %1915 = vmatprep.subr.bf16.mxu0 0
        %1916 = vmatpush1.bf16.msra.mxu0 0
        %1917 = vmatprep.mubr.bf16.mxu0 0
        %1918 = vmatmul.mubr.bf16.gmra.mrb[0].mxu0 %v1840
        %v1919 = vpop.f32.mrb[0].mxu0
        %v1920 = vadd.f32 %v1826, %v1919
        %v1921 = vpop.f32.mrb[0].mxu0
        %v1922 = vadd.f32 %v1826, %v1921
        %v1923 = vpop.f32.mrb[0].mxu0
        %v1924 = vadd.f32 %v1831, %v1923
        %v1925 = vpop.f32.mrb[0].mxu0
        %v1926 = vadd.f32 %v1831, %v1925
        %1927 = vdwg.mxu0
        %1938 = vrot.lane.b32.xlu0 %v1811, 121
        %v1939 = vpop.permute.xlu0 %1938
        %1940 = vrot.lane.b32.xlu0 %v1812, 121
        %v1941 = vpop.permute.xlu0 %1940
        %1942 = vrot.lane.b32.xlu0 %v1813, 121
        %v1943 = vpop.permute.xlu0 %1942
        %1944 = vrot.lane.b32.xlu0 %v1814, 121
        %v1945 = vpop.permute.xlu0 %1944
        %1946 = vrot.lane.b32.xlu0 %v1815, 121
        %v1947 = vpop.permute.xlu0 %1946
        %1948 = vrot.lane.b32.xlu0 %v1816, 121
        %v1949 = vpop.permute.xlu0 %1948
        %1950 = vrot.lane.b32.xlu0 %v1817, 121
        %v1951 = vpop.permute.xlu0 %1950
        %1952 = vrot.lane.b32.xlu0 %v1818, 121
        %v1953 = vpop.permute.xlu0 %1952
        %1954 = vrot.lane.b32.xlu0 %v1819, 121
        %v1955 = vpop.permute.xlu0 %1954
        %1956 = vrot.lane.b32.xlu0 %v1820, 121
        %v1957 = vpop.permute.xlu0 %1956
        %vm1958 = vcmask 990208
        %v1959 = vsel %vm1958, %v1939, %v1941
        %v1960 = vsel %vm1958, %v1941, %v1943
        %v1961 = vsel %vm1958, %v1943, %v1945
        %v1962 = vsel %vm1958, %v1945, %v1947
        %v1963 = vsel %vm1958, %v1949, %v1951
        %v1964 = vsel %vm1958, %v1951, %v1953
        %v1965 = vsel %vm1958, %v1953, %v1955
        %v1966 = vsel %vm1958, %v1955, %v1957
        %v1975 = vadd.f32 %v1877, %v1959
        %v1976 = vadd.f32 %v1879, %v1960
        %v1977 = vadd.f32 %v1920, %v1961
        %v1978 = vadd.f32 %v1922, %v1962
        %v1979 = vadd.f32 %v1881, %v1963
        %v1980 = vadd.f32 %v1883, %v1964
        %v1981 = vadd.f32 %v1924, %v1965
        %v1982 = vadd.f32 %v1926, %v1966
        %v1983 = vmax.f32 %v1975, 0.0
        %v1984 = vmax.f32 %v1976, 0.0
        %v1985 = vmax.f32 %v1977, 0.0
        %v1986 = vmax.f32 %v1978, 0.0
        %v1987 = vmax.f32 %v1979, 0.0
        %v1988 = vmax.f32 %v1980, 0.0
        %v1989 = vmax.f32 %v1981, 0.0
        %v1990 = vmax.f32 %v1982, 0.0
        %1991 = vst [vmem:[%s242] sm:$0xff] %v1983
        %1992 = vst [vmem:[%s242 + $0x8] sm:$0xff] %v1984
        %1993 = vst [vmem:[%s242 + $0x10] sm:$0xff] %v1985
        %1994 = vst [vmem:[%s242 + $0x18] sm:$0xff] %v1986
        %1995 = vst [vmem:[%s242 + $0x20] sm:$0xff] %v1987
        %1996 = vst [vmem:[%s242 + $0x28] sm:$0xff] %v1988
        %1997 = vst [vmem:[%s242 + $0x30] sm:$0xff] %v1989
        %1998 = vst [vmem:[%s242 + $0x38] sm:$0xff] %v1990
        %s1999 = sand.u32 %s140, 1
        %s2000 = scalar_lea.sflag [#allocation5], %s1999
        %s2001 = sand.u32 %s140, 1
        %s2002 = smul.addr %s2001, 64
        %s2003 = scalar_lea.vmem [#allocation6], %s2002
        // Predicated region
        $region45: #{tpu_custom_call.1} parent=39 // pred_check
          %p2004 = pneg %p150
        $region46: #{tpu_custom_call.1} parent=39 // pred_check_branch
          %2006 = sbr.rel (%p2004) target = $region48
        $region47: #{tpu_custom_call.1} parent=39 // pred_region
          %s2008 = ssub.s32 1024, 1024
          %2009 = vsyncadd %s2000, %s2008
          %s2010 = smul.addr %s22, 8
          %s2011 = smul.addr %s2010, 128
          %s2012 = scalar_lea.hbm %s5, %s2011
          %s2013 = sshll.u32 %s2003, 4
          %s2014 = int_to_ptr.vmem [resolvable:$true] %s2013
          %2019 = dma.vmem_to_hbm [thread:$0]  %s2014, 1024, %s2012, %s2000, 512, 512, 32
        $region48: #{tpu_custom_call.1} parent=39 // pred_fallthru
          _
      $region40: #{tpu_custom_call.1} parent=5 // pred_fallthru
        _
      %p2020 = scmp.le.s32.totalorder 2, %s17
      // Predicated region
      $region49: #{tpu_custom_call.1} parent=5 // pred_check
        %p2021 = pneg %p2020
      $region50: #{tpu_custom_call.1} parent=5 // pred_check_branch
        %2023 = sbr.rel (%p2021) target = $region52
      $region51: #{tpu_custom_call.1} parent=5 // pred_region
        %s2024 = ssub.s32 %s17, 2
        // Predicated region
        $region53: #{tpu_custom_call.1} parent=51 // pred_check
          %p2025 = pneg %p156
        $region54: #{tpu_custom_call.1} parent=51 // pred_check_branch
          %2027 = sbr.rel (%p2025) target = $region56
        $region55: #{tpu_custom_call.1} parent=51 // pred_region
          %s2028 = sand.u32 %s141, 1
          %s2029 = scalar_lea.sflag [#allocation5], %s2028
          %s2030 = sand.u32 %s141, 1
          %s2031 = smul.addr %s2030, 64
          %s2032 = scalar_lea.vmem [#allocation6], %s2031
          %2033 = dma.done %s2029, 1024
        $region56: #{tpu_custom_call.1} parent=51 // pred_fallthru
          _
      $region52: #{tpu_custom_call.1} parent=5 // pred_fallthru
        _
    $region6: #{tpu_custom_call.1} parent=1 // loop_footer
      %s21 = sadd.s32 1, %s17
    $region7: #{tpu_custom_call.1} parent=1 // loop_footer_branch
      %16 = sbr.rel target = $region3
    $region8: #{tpu_custom_call.1} parent=1 // loop_exit
      _
    %2034 = vsyncpa [#allocation4], 1
    %s2035 = scalar_lea.sflag [#allocation4], 1
    %2036 = vsyncpa %s2035, 1
    %2037 = vsyncpa [#allocation5], 1
    %s2038 = scalar_lea.sflag [#allocation5], 1
    %2039 = vsyncpa %s2038, 1

</llo_original>
